<compile_context>
chip_gen: v7x
topology: tpu7x:2x2x1
jax: 0.10.0
libtpu: 0.0.40
codegen_flags: <defaults>
</compile_context>

<pallas_src>
import functools

import jax
import jax.numpy as jnp
import numpy as np
from jax.experimental import pallas as pl
from jax.experimental.pallas import tpu as pltpu


def _round_up(a, m):
    return (a + m - 1) // m * m


def _cdiv(a, b):
    return -(-a // b)


def _buffered(n):
    # pipeline_mode knob; fall back to default double-buffering if unavailable.
    return pl.Buffered(n) if hasattr(pl, "Buffered") else None


def _vmem_capacity_bytes():
    try:
        return int(pltpu.get_tpu_info().vmem_capacity_bytes)
    except Exception:
        return 64 << 20  # conservative: v7x has 64 MiB VMEM per TensorCore


def _choose_batch_tiling(B, big_vmem):
    """Pick (TB, nblk, B_pad): >=2 blocks for megacore once B is moderate,
    tile size derived from the real batch to minimize padding waste."""
    tb_max = 512 if big_vmem else 256
    if B < 64:
        TB = _round_up(max(B, 8), 8)
        nblk = 1
    else:
        nblk = max(2, _cdiv(B, tb_max))
        TB = _round_up(_cdiv(B, nblk), 16)
        nblk = _cdiv(B, TB)
    return TB, nblk, TB * nblk


def _nn_kernel(x_ref, p2r_ref,
               w1_ref, b1_ref, w2_ref, b2_ref, w3_ref, b3_ref,
               wh_ref, bh_ref,
               heads_ref, zs_ref):
    wdt = w1_ref.dtype  # bf16 weights -> bf16 MXU operands, f32 accumulation
    x = x_ref[...]

    # fully_connected: Linear(F,512)+ReLU -> Linear(512,256)+ReLU -> Linear(256,128)+ReLU
    h = jnp.dot(x.astype(wdt), w1_ref[...], preferred_element_type=jnp.float32)
    h = jnp.maximum(h + b1_ref[...], 0.0)
    h = jnp.dot(h.astype(wdt), w2_ref[...], preferred_element_type=jnp.float32)
    h = jnp.maximum(h + b2_ref[...], 0.0)
    h = jnp.dot(h.astype(wdt), w3_ref[...], preferred_element_type=jnp.float32)
    h = jnp.maximum(h + b3_ref[...], 0.0)

    # Fused heads: [TB, 2*O_pad], lane-dense store (padded columns are exactly 0).
    heads = jnp.dot(h.astype(wdt), wh_ref[...],
                    preferred_element_type=jnp.float32) + bh_ref[...]
    heads_ref[...] = heads

    # torch.tensordot(ranges, values, dims=2) == full contraction -> scalar.
    # p1's range starts at column 0 so it is read straight from the x tile
    # (columns O..O_pad of the p1 head are zero and padded batch rows of x are
    # zero, so padding contributes nothing). p2's range is not lane-aligned and
    # comes pre-sliced/zero-padded from the wrapper.
    o_pad = p2r_ref.shape[-1]
    p1 = heads[:, :o_pad]
    p2 = heads[:, o_pad:]
    p1_dot = jnp.sum(x[:, :o_pad] * p1)
    p2_dot = jnp.sum(p2r_ref[...] * p2)
    zs_ref[0, 0] = p1_dot - p2_dot


def prepare_params(params, *, use_bf16=True):
    """One-time prep (hoisted out of the forward path): fuse + pad the two head
    layers into a lane-dense [128, 2*O_pad] weight and optionally cast matmul
    weights to bf16 (accumulation stays f32)."""
    O = params["wp1"].shape[1]
    O_pad = _round_up(O, 128)
    N = 2 * O_pad
    wdt = jnp.bfloat16 if use_bf16 else jnp.float32

    wh = jnp.zeros((128, N), jnp.float32)
    wh = wh.at[:, :O].set(params["wp1"]).at[:, O_pad:O_pad + O].set(params["wp2"])
    bh = jnp.zeros((1, N), jnp.float32)
    bh = bh.at[:, :O].set(params["bp1"]).at[:, O_pad:O_pad + O].set(params["bp2"])

    return dict(
        w1=params["w1"].astype(wdt), b1=params["b1"].astype(jnp.float32),
        w2=params["w2"].astype(wdt), b2=params["b2"].astype(jnp.float32),
        w3=params["w3"].astype(wdt), b3=params["b3"].astype(jnp.float32),
        wh=wh.astype(wdt), bh=bh,
    )


@functools.partial(jax.jit, static_argnames=("output_size", "is_limited"))
def neural_network_forward(x, prepped, *, output_size, is_limited):
    """Returns (p1_values, p2_values, zero_sums) like the PyTorch module."""
    B, F = x.shape
    O = output_size
    O_pad = _round_up(O, 128)
    N_heads = 2 * O_pad
    assert prepped["wh"].shape == (128, N_heads)
    assert prepped["w1"].shape[0] == F

    p1_s = (0, 275) if is_limited else (0, 1325)
    p2_s = (302, 577) if is_limited else (1380, 2705)
    # torch.tensordot(dims=2) requires slice width == output_size.
    assert O == p1_s[1] - p1_s[0] == p2_s[1] - p2_s[0]
    assert p1_s[0] == 0                 # in-kernel p1_dot relies on this
    assert F >= p2_s[1] and F >= O_pad

    w_bytes = jnp.dtype(prepped["w1"].dtype).itemsize
    vmem_cap = _vmem_capacity_bytes()
    big_vmem = vmem_cap >= (96 << 20)   # v5e / v6e: 128 MiB; v7x: 64 MiB

    TB, nblk, B_pad = _choose_batch_tiling(B, big_vmem)
    stream_bufs = 3 if (big_vmem and nblk >= 3) else 2   # deeper pipelining on v5e/v6e

    def vmem_estimate(tb):
        stream = 4 * tb * (F + O_pad) * stream_bufs                  # x + p2r tiles
        out = 4 * tb * N_heads * 2                                    # fused head output
        weights = w_bytes * (F * 512 + 512 * 256 + 256 * 128 + 128 * N_heads)
        biases = 4 * (512 + 256 + 128 + N_heads)
        return stream + out + weights + biases + (2 << 20)            # + scratch slack

    while vmem_estimate(TB) > int(0.7 * vmem_cap) and TB > 16:
        TB = max(16, _round_up(TB // 2, 8))
        nblk = _cdiv(B, TB)
        B_pad = nblk * TB

    x_p = jnp.pad(x, ((0, B_pad - B), (0, 0))) if B_pad != B else x
    # p2's slice start (302 / 1380) is not lane-aligned: slice + zero-pad in XLA.
    p2r = jnp.pad(x_p[:, p2_s[0]:p2_s[1]], ((0, 0), (0, O_pad - O)))

    vmem_limit = int(min(max(vmem_estimate(TB) + (4 << 20), 24 << 20),
                         int(0.75 * vmem_cap)))

    flops = 2 * B_pad * (F * 512 + 512 * 256 + 256 * 128 + 128 * N_heads)
    bytes_accessed = (4 * (B_pad * F + B_pad * O_pad + B_pad * N_heads + nblk)
                      + w_bytes * (F * 512 + 512 * 256 + 256 * 128 + 128 * N_heads)
                      + 4 * (512 + 256 + 128 + N_heads))
    cost = pl.CostEstimate(flops=int(flops), transcendentals=0,
                           bytes_accessed=int(bytes_accessed))

    stream_pm = _buffered(stream_bufs) if stream_bufs != 2 else None
    weight_pm = _buffered(1)            # weight blocks never change across steps

    grid_spec = pltpu.PrefetchScalarGridSpec(
        num_scalar_prefetch=0,
        grid=(nblk,),
        in_specs=[
            pl.BlockSpec((TB, F), lambda i: (i, 0), pipeline_mode=stream_pm),       # x tile
            pl.BlockSpec((TB, O_pad), lambda i: (i, 0), pipeline_mode=stream_pm),   # p2 ranges
            pl.BlockSpec((F, 512), lambda i: (0, 0), pipeline_mode=weight_pm),      # resident weights
            pl.BlockSpec((1, 512), lambda i: (0, 0), pipeline_mode=weight_pm),
            pl.BlockSpec((512, 256), lambda i: (0, 0), pipeline_mode=weight_pm),
            pl.BlockSpec((1, 256), lambda i: (0, 0), pipeline_mode=weight_pm),
            pl.BlockSpec((256, 128), lambda i: (0, 0), pipeline_mode=weight_pm),
            pl.BlockSpec((1, 128), lambda i: (0, 0), pipeline_mode=weight_pm),
            pl.BlockSpec((128, N_heads), lambda i: (0, 0), pipeline_mode=weight_pm),
            pl.BlockSpec((1, N_heads), lambda i: (0, 0), pipeline_mode=weight_pm),
        ],
        out_specs=(
            pl.BlockSpec((TB, N_heads), lambda i: (i, 0)),       # fused head output
            pl.BlockSpec((1, 1), lambda i: (i, 0),               # per-tile zero_sum partial
                         memory_space=pltpu.MemorySpace.SMEM),
        ),
    )

    heads, zs_part = pl.pallas_call(
        _nn_kernel,
        out_shape=(
            jax.ShapeDtypeStruct((B_pad, N_heads), jnp.float32),
            jax.ShapeDtypeStruct((nblk, 1), jnp.float32),
        ),
        grid_spec=grid_spec,
        compiler_params=pltpu.CompilerParams(
            dimension_semantics=("parallel",),
            vmem_limit_bytes=vmem_limit),
        cost_estimate=cost,
    )(x_p, p2r,
      prepped["w1"], prepped["b1"],
      prepped["w2"], prepped["b2"],
      prepped["w3"], prepped["b3"],
      prepped["wh"], prepped["bh"])

    p1 = heads[:B, :O]
    p2 = heads[:B, O_pad:O_pad + O]
    zero_sums = jnp.sum(zs_part)
    return p1, p2, zero_sums


def init_params(key, input_size, output_size):
    """Deterministic PyTorch-style uniform(-1/sqrt(fan_in), 1/sqrt(fan_in)) init."""
    def linear(k, fan_in, fan_out):
        kw, kb = jax.random.split(k)
        bound = 1.0 / np.sqrt(fan_in)
        w = jax.random.uniform(kw, (fan_in, fan_out), jnp.float32, -bound, bound)
        b = jax.random.uniform(kb, (1, fan_out), jnp.float32, -bound, bound)
        return w, b

    k1, k2, k3, k4, k5 = jax.random.split(key, 5)
    w1, b1 = linear(k1, input_size, 512)
    w2, b2 = linear(k2, 512, 256)
    w3, b3 = linear(k3, 256, 128)
    wp1, bp1 = linear(k4, 128, output_size)
    wp2, bp2 = linear(k5, 128, output_size)
    return dict(w1=w1, b1=b1, w2=w2, b2=b2, w3=w3, b3=b3,
                wp1=wp1, bp1=bp1, wp2=wp2, bp2=bp2)


def reference_forward(x, params, is_limited, *, matmul_dtype=jnp.float32):
    """Pure-JAX reference. matmul_dtype=bf16 mirrors the kernel numerics
    (bf16 MXU operands, f32 accumulation); f32 is the exact module math."""
    p1_s = (0, 275) if is_limited else (0, 1325)
    p2_s = (302, 577) if is_limited else (1380, 2705)

    def dot(a, w):
        return jnp.dot(a.astype(matmul_dtype), w.astype(matmul_dtype),
                       preferred_element_type=jnp.float32)

    h = jnp.maximum(dot(x, params["w1"]) + params["b1"], 0.0)
    h = jnp.maximum(dot(h, params["w2"]) + params["b2"], 0.0)
    h = jnp.maximum(dot(h, params["w3"]) + params["b3"], 0.0)
    p1 = dot(h, params["wp1"]) + params["bp1"]
    p2 = dot(h, params["wp2"]) + params["bp2"]
    p1_dot = jnp.sum(x[:, p1_s[0]:p1_s[1]] * p1)
    p2_dot = jnp.sum(x[:, p2_s[0]:p2_s[1]] * p2)
    return p1, p2, p1_dot - p2_dot


if __name__ == "__main__":
    # is_limited=True => p1 slice width 275, p2 slice ends at 577, so
    # input_size must be >= 577 and output_size must be 275 (tensordot dims=2).
    B = 8
    INPUT_SIZE = 600
    OUTPUT_SIZE = 275
    IS_LIMITED = True

    key = jax.random.PRNGKey(0)
    k_params, k_x = jax.random.split(key)
    params = init_params(k_params, INPUT_SIZE, OUTPUT_SIZE)
    x = jax.random.normal(k_x, (B, INPUT_SIZE), jnp.float32)

    # One-time prep: fuse/pad head weights + bf16 cast (not paid per forward call).
    prepped = prepare_params(params, use_bf16=True)

    p1, p2, zs = neural_network_forward(x, prepped, output_size=OUTPUT_SIZE,
                                        is_limited=IS_LIMITED)
    jax.block_until_ready((p1, p2, zs))

    # 1) matched-numerics reference (bf16 MXU operands, f32 accumulation).
    p1_m, p2_m, zs_m = reference_forward(x, params, IS_LIMITED,
                                         matmul_dtype=jnp.bfloat16)
    np.testing.assert_allclose(np.asarray(p1), np.asarray(p1_m), rtol=2e-3, atol=2e-3)
    np.testing.assert_allclose(np.asarray(p2), np.asarray(p2_m), rtol=2e-3, atol=2e-3)
    np.testing.assert_allclose(np.asarray(zs), np.asarray(zs_m), rtol=2e-3, atol=2e-2)

    # 2) loose sanity check against the exact f32 module math (bf16 weights
    #    intentionally change numerics slightly, per the performance review).
    p1_f, p2_f, zs_f = reference_forward(x, params, IS_LIMITED,
                                         matmul_dtype=jnp.float32)
    np.testing.assert_allclose(np.asarray(p1), np.asarray(p1_f), rtol=5e-2, atol=5e-2)
    np.testing.assert_allclose(np.asarray(p2), np.asarray(p2_f), rtol=5e-2, atol=5e-2)
    np.testing.assert_allclose(np.asarray(zs), np.asarray(zs_f), rtol=1e-1, atol=5e-1)

    print("KERNEL_OK")
</pallas_src>

<mosaic_0001>
module attributes {stable_mosaic.version = 11 : i64} {
  func.func @_nn_kernel(%arg0: i32, %arg1: memref<8x600xf32, #tpu.memory_space<vmem>>, %arg2: memref<8x384xf32, #tpu.memory_space<vmem>>, %arg3: memref<600x512xbf16, #tpu.memory_space<vmem>>, %arg4: memref<1x512xf32, #tpu.memory_space<vmem>>, %arg5: memref<512x256xbf16, #tpu.memory_space<vmem>>, %arg6: memref<1x256xf32, #tpu.memory_space<vmem>>, %arg7: memref<256x128xbf16, #tpu.memory_space<vmem>>, %arg8: memref<1x128xf32, #tpu.memory_space<vmem>>, %arg9: memref<128x768xbf16, #tpu.memory_space<vmem>>, %arg10: memref<1x768xf32, #tpu.memory_space<vmem>>, %arg11: memref<8x768xf32, #tpu.memory_space<vmem>>, %arg12: memref<1x1xf32, #tpu.memory_space<smem>>) attributes {dimension_semantics = [#tpu.dimension_semantics<parallel>], iteration_bounds = array<i64: 1>, scalar_prefetch = 0 : i64, scratch_operands = 0 : i64, tpu.core_type = #tpu.core_type<tc>, window_params = [{transform_indices = @transform_0, window_bounds = array<i64: 8, 600>}, {transform_indices = @transform_1, window_bounds = array<i64: 8, 384>}, {pipeline_mode = #tpu.pipeline_mode<synchronous>, transform_indices = @transform_2, window_bounds = array<i64: 600, 512>}, {pipeline_mode = #tpu.pipeline_mode<synchronous>, transform_indices = @transform_3, window_bounds = array<i64: 1, 512>}, {pipeline_mode = #tpu.pipeline_mode<synchronous>, transform_indices = @transform_4, window_bounds = array<i64: 512, 256>}, {pipeline_mode = #tpu.pipeline_mode<synchronous>, transform_indices = @transform_5, window_bounds = array<i64: 1, 256>}, {pipeline_mode = #tpu.pipeline_mode<synchronous>, transform_indices = @transform_6, window_bounds = array<i64: 256, 128>}, {pipeline_mode = #tpu.pipeline_mode<synchronous>, transform_indices = @transform_7, window_bounds = array<i64: 1, 128>}, {pipeline_mode = #tpu.pipeline_mode<synchronous>, transform_indices = @transform_8, window_bounds = array<i64: 128, 768>}, {pipeline_mode = #tpu.pipeline_mode<synchronous>, transform_indices = @transform_9, window_bounds = array<i64: 1, 768>}, {transform_indices = @transform_10, window_bounds = array<i64: 8, 768>}, {transform_indices = @transform_11, window_bounds = array<i64: 1, 1>}]} {
    %c0 = arith.constant 0 : index
    %c0_0 = arith.constant 0 : index
    %0 = vector.load %arg1[%c0, %c0_0] : memref<8x600xf32, #tpu.memory_space<vmem>>, vector<8x600xf32>
    %1 = arith.truncf %0 : vector<8x600xf32> to vector<8x600xbf16>
    %c0_1 = arith.constant 0 : index
    %c0_2 = arith.constant 0 : index
    %2 = vector.load %arg3[%c0_1, %c0_2] : memref<600x512xbf16, #tpu.memory_space<vmem>>, vector<600x512xbf16>
    %cst = arith.constant dense<0.000000e+00> : vector<8x512xf32>
    %3 = tpu.matmul %1, %2, %cst {dimension_numbers = #tpu.dot_dimension_numbers<[1], [0], [0], [1], [0, 0, 1, 1], [], []>} : vector<8x600xbf16>, vector<600x512xbf16>, vector<8x512xf32> -> vector<8x512xf32>
    %c0_3 = arith.constant 0 : index
    %c0_4 = arith.constant 0 : index
    %4 = vector.load %arg4[%c0_3, %c0_4] : memref<1x512xf32, #tpu.memory_space<vmem>>, vector<1x512xf32>
    %5 = vector.broadcast %4 : vector<1x512xf32> to vector<8x512xf32>
    %6 = arith.addf %3, %5 : vector<8x512xf32>
    %cst_5 = arith.constant 0.000000e+00 : f32
    %7 = vector.broadcast %cst_5 : f32 to vector<8x512xf32>
    %8 = arith.maximumf %6, %7 : vector<8x512xf32>
    %9 = arith.truncf %8 : vector<8x512xf32> to vector<8x512xbf16>
    %c0_6 = arith.constant 0 : index
    %c0_7 = arith.constant 0 : index
    %10 = vector.load %arg5[%c0_6, %c0_7] : memref<512x256xbf16, #tpu.memory_space<vmem>>, vector<512x256xbf16>
    %cst_8 = arith.constant dense<0.000000e+00> : vector<8x256xf32>
    %11 = tpu.matmul %9, %10, %cst_8 {dimension_numbers = #tpu.dot_dimension_numbers<[1], [0], [0], [1], [0, 0, 1, 1], [], []>} : vector<8x512xbf16>, vector<512x256xbf16>, vector<8x256xf32> -> vector<8x256xf32>
    %c0_9 = arith.constant 0 : index
    %c0_10 = arith.constant 0 : index
    %12 = vector.load %arg6[%c0_9, %c0_10] : memref<1x256xf32, #tpu.memory_space<vmem>>, vector<1x256xf32>
    %13 = vector.broadcast %12 : vector<1x256xf32> to vector<8x256xf32>
    %14 = arith.addf %11, %13 : vector<8x256xf32>
    %cst_11 = arith.constant 0.000000e+00 : f32
    %15 = vector.broadcast %cst_11 : f32 to vector<8x256xf32>
    %16 = arith.maximumf %14, %15 : vector<8x256xf32>
    %17 = arith.truncf %16 : vector<8x256xf32> to vector<8x256xbf16>
    %c0_12 = arith.constant 0 : index
    %c0_13 = arith.constant 0 : index
    %18 = vector.load %arg7[%c0_12, %c0_13] : memref<256x128xbf16, #tpu.memory_space<vmem>>, vector<256x128xbf16>
    %cst_14 = arith.constant dense<0.000000e+00> : vector<8x128xf32>
    %19 = tpu.matmul %17, %18, %cst_14 {dimension_numbers = #tpu.dot_dimension_numbers<[1], [0], [0], [1], [0, 0, 1, 1], [], []>} : vector<8x256xbf16>, vector<256x128xbf16>, vector<8x128xf32> -> vector<8x128xf32>
    %c0_15 = arith.constant 0 : index
    %c0_16 = arith.constant 0 : index
    %20 = vector.load %arg8[%c0_15, %c0_16] : memref<1x128xf32, #tpu.memory_space<vmem>>, vector<1x128xf32>
    %21 = vector.broadcast %20 : vector<1x128xf32> to vector<8x128xf32>
    %22 = arith.addf %19, %21 : vector<8x128xf32>
    %cst_17 = arith.constant 0.000000e+00 : f32
    %23 = vector.broadcast %cst_17 : f32 to vector<8x128xf32>
    %24 = arith.maximumf %22, %23 : vector<8x128xf32>
    %25 = arith.truncf %24 : vector<8x128xf32> to vector<8x128xbf16>
    %c0_18 = arith.constant 0 : index
    %c0_19 = arith.constant 0 : index
    %26 = vector.load %arg9[%c0_18, %c0_19] : memref<128x768xbf16, #tpu.memory_space<vmem>>, vector<128x768xbf16>
    %cst_20 = arith.constant dense<0.000000e+00> : vector<8x768xf32>
    %27 = tpu.matmul %25, %26, %cst_20 {dimension_numbers = #tpu.dot_dimension_numbers<[1], [0], [0], [1], [0, 0, 1, 1], [], []>} : vector<8x128xbf16>, vector<128x768xbf16>, vector<8x768xf32> -> vector<8x768xf32>
    %c0_21 = arith.constant 0 : index
    %c0_22 = arith.constant 0 : index
    %28 = vector.load %arg10[%c0_21, %c0_22] : memref<1x768xf32, #tpu.memory_space<vmem>>, vector<1x768xf32>
    %29 = vector.broadcast %28 : vector<1x768xf32> to vector<8x768xf32>
    %30 = arith.addf %27, %29 : vector<8x768xf32>
    %c0_23 = arith.constant 0 : index
    %c0_24 = arith.constant 0 : index
    %31 = vector.load %arg11[%c0_23, %c0_24] : memref<8x768xf32, #tpu.memory_space<vmem>>, vector<8x768xf32>
    tpu.vector_store %arg11[%c0_23, %c0_24], %30 {strides = array<i32>} : memref<8x768xf32, #tpu.memory_space<vmem>>, vector<8x768xf32>,
    %32 = vector.extract_strided_slice %30 {offsets = [0, 0], sizes = [8, 384], strides = [1, 1]} : vector<8x768xf32> to vector<8x384xf32>
    %33 = vector.extract_strided_slice %30 {offsets = [0, 384], sizes = [8, 384], strides = [1, 1]} : vector<8x768xf32> to vector<8x384xf32>
    %34 = vector.extract_strided_slice %0 {offsets = [0, 0], sizes = [8, 384], strides = [1, 1]} : vector<8x600xf32> to vector<8x384xf32>
    %35 = arith.mulf %34, %32 : vector<8x384xf32>
    %36 = vector.shape_cast %35 : vector<8x384xf32> to vector<1x8x384xf32>
    %cst_25 = arith.constant dense<0.000000e+00> : vector<1xf32>
    %37 = vector.multi_reduction <add>, %36, %cst_25 [1, 2] : vector<1x8x384xf32> to vector<1xf32>
    %38 = vector.shape_cast %37 : vector<1xf32> to vector<1x1x1xf32>
    %39 = vector.extract %38[0, 0, 0] : f32 from vector<1x1x1xf32>
    %c0_26 = arith.constant 0 : index
    %c0_27 = arith.constant 0 : index
    %40 = vector.load %arg2[%c0_26, %c0_27] : memref<8x384xf32, #tpu.memory_space<vmem>>, vector<8x384xf32>
    %41 = arith.mulf %40, %33 : vector<8x384xf32>
    %42 = vector.shape_cast %41 : vector<8x384xf32> to vector<1x8x384xf32>
    %cst_28 = arith.constant dense<0.000000e+00> : vector<1xf32>
    %43 = vector.multi_reduction <add>, %42, %cst_28 [1, 2] : vector<1x8x384xf32> to vector<1xf32>
    %44 = vector.shape_cast %43 : vector<1xf32> to vector<1x1x1xf32>
    %45 = vector.extract %44[0, 0, 0] : f32 from vector<1x1x1xf32>
    %46 = arith.subf %39, %45 : f32
    %c0_29 = arith.constant 0 : index
    %c0_30 = arith.constant 0 : index
    %47 = memref.load %arg12[%c0_29, %c0_30] : memref<1x1xf32, #tpu.memory_space<smem>>
    memref.store %46, %arg12[%c0_29, %c0_30] : memref<1x1xf32, #tpu.memory_space<smem>>
    return
  }
  func.func @transform_0(%arg0: i32) -> (i32, i32) {
    %c0_i32 = arith.constant 0 : i32
    %c0_i32_0 = arith.constant 0 : i32
    return %arg0, %c0_i32 : i32, i32
  }
  func.func @transform_1(%arg0: i32) -> (i32, i32) {
    %c0_i32 = arith.constant 0 : i32
    %c0_i32_0 = arith.constant 0 : i32
    return %arg0, %c0_i32 : i32, i32
  }
  func.func @transform_2(%arg0: i32) -> (i32, i32) {
    %c0_i32 = arith.constant 0 : i32
    %c0_i32_0 = arith.constant 0 : i32
    %c0_i32_1 = arith.constant 0 : i32
    return %c0_i32, %c0_i32_0 : i32, i32
  }
  func.func @transform_3(%arg0: i32) -> (i32, i32) {
    %c0_i32 = arith.constant 0 : i32
    %c0_i32_0 = arith.constant 0 : i32
    %c0_i32_1 = arith.constant 0 : i32
    return %c0_i32, %c0_i32_0 : i32, i32
  }
  func.func @transform_4(%arg0: i32) -> (i32, i32) {
    %c0_i32 = arith.constant 0 : i32
    %c0_i32_0 = arith.constant 0 : i32
    %c0_i32_1 = arith.constant 0 : i32
    return %c0_i32, %c0_i32_0 : i32, i32
  }
  func.func @transform_5(%arg0: i32) -> (i32, i32) {
    %c0_i32 = arith.constant 0 : i32
    %c0_i32_0 = arith.constant 0 : i32
    %c0_i32_1 = arith.constant 0 : i32
    return %c0_i32, %c0_i32_0 : i32, i32
  }
  func.func @transform_6(%arg0: i32) -> (i32, i32) {
    %c0_i32 = arith.constant 0 : i32
    %c0_i32_0 = arith.constant 0 : i32
    %c0_i32_1 = arith.constant 0 : i32
    return %c0_i32, %c0_i32_0 : i32, i32
  }
  func.func @transform_7(%arg0: i32) -> (i32, i32) {
    %c0_i32 = arith.constant 0 : i32
    %c0_i32_0 = arith.constant 0 : i32
    %c0_i32_1 = arith.constant 0 : i32
    return %c0_i32, %c0_i32_0 : i32, i32
  }
  func.func @transform_8(%arg0: i32) -> (i32, i32) {
    %c0_i32 = arith.constant 0 : i32
    %c0_i32_0 = arith.constant 0 : i32
    %c0_i32_1 = arith.constant 0 : i32
    return %c0_i32, %c0_i32_0 : i32, i32
  }
  func.func @transform_9(%arg0: i32) -> (i32, i32) {
    %c0_i32 = arith.constant 0 : i32
    %c0_i32_0 = arith.constant 0 : i32
    %c0_i32_1 = arith.constant 0 : i32
    return %c0_i32, %c0_i32_0 : i32, i32
  }
  func.func @transform_10(%arg0: i32) -> (i32, i32) {
    %c0_i32 = arith.constant 0 : i32
    %c0_i32_0 = arith.constant 0 : i32
    return %arg0, %c0_i32 : i32, i32
  }
  func.func @transform_11(%arg0: i32) -> (i32, i32) {
    %c0_i32 = arith.constant 0 : i32
    %c0_i32_0 = arith.constant 0 : i32
    return %arg0, %c0_i32 : i32, i32
  }
}

</mosaic_0001>

<llo_original>
// kernel: neural_network_forward.1
$region0: #{neural_network_forward.1}
  #allocation0 [shape = 'u32[]', space=smem, size = 0x4, offset = 0x4, fixed_abs, tag = 'smem constant byte address 0x4 - core index']
  #allocation1 [shape = 'u32[144,128]{1,0:T(1,128)}', space=vmem, size = 0x12000, scoped, tag = 'internal scratch']
  %s0 = inlined_call_operand.vmem [shape: f32[8,600], index: 0, kind: input, shape index: {}]
  %s1 = inlined_call_operand.vmem [shape: f32[8,384], index: 1, kind: input, shape index: {}]
  %s2 = inlined_call_operand.hbm [shape: bf16[600,512], index: 2, kind: input, shape index: {}]
  %s3 = inlined_call_operand.vmem [shape: f32[1,512], index: 3, kind: input, shape index: {}]
  %s4 = inlined_call_operand.hbm [shape: bf16[512,256], index: 4, kind: input, shape index: {}]
  %s5 = inlined_call_operand.vmem [shape: f32[1,256], index: 5, kind: input, shape index: {}]
  %s6 = inlined_call_operand.hbm [shape: bf16[256,128], index: 6, kind: input, shape index: {}]
  %s7 = inlined_call_operand.vmem [shape: f32[1,128], index: 7, kind: input, shape index: {}]
  %s8 = inlined_call_operand.hbm [shape: bf16[128,768], index: 8, kind: input, shape index: {}]
  %s9 = inlined_call_operand.vmem [shape: f32[1,768], index: 9, kind: input, shape index: {}]
  %s10 = inlined_call_operand.vmem [shape: f32[8,768], index: 10, kind: output, shape index: {0}]
  %s11 = inlined_call_operand.hbm [shape: f32[1,1], index: 11, kind: output, shape index: {1}]
  %12 = xla_tuple %s10, %s11
  %s13 = sld [smem:[#allocation0]]
  $region74: #{neural_network_forward.1} parent=0
    _
  %s15 = ssub.s32 1, %s13
  %s16 = scalar_select 0, %s15, %s13
  $region1: #{neural_network_forward.1} parent=0
    #allocation2 [shape = 'u8[614400]{0}', space=vmem, size = 0x96000, scoped, tag = 'input window, operand 2, single buffered']
    #allocation3 [shape = 's32[1]{0}', space=sflag, size = 0x4, scoped, tag = 'scoped memory for neural_network_forward.1']
    #allocation4 [shape = 's32[1]{0}', space=sflag, size = 0x4, scoped, tag = 'scoped memory for neural_network_forward.1']
    #allocation5 [shape = 'u8[262144]{0}', space=vmem, size = 0x40000, scoped, tag = 'input window, operand 4, single buffered']
    #allocation6 [shape = 's32[1]{0}', space=sflag, size = 0x4, scoped, tag = 'scoped memory for neural_network_forward.1']
    #allocation7 [shape = 'u8[65536]{0}', space=vmem, size = 0x10000, scoped, tag = 'input window, operand 6, single buffered']
    #allocation8 [shape = 'u8[196608]{0}', space=vmem, size = 0x30000, scoped, tag = 'input window, operand 8, single buffered']
    #allocation9 [shape = 's32[1]{0}', space=sflag, size = 0x4, scoped, tag = 'scoped memory for neural_network_forward.1']
    #allocation10 [shape = 'u8[512]{0}', space=smem, size = 0x200, scoped, tag = 'output window, operand 1, single buffered']
    %17 = vsyncpa [#allocation3], 0
    %18 = vsyncpa [#allocation6], 0
    %19 = vsyncpa [#allocation9], 0
    %20 = vsyncpa [#allocation4], 0
    // Predicated region
    $region2: #{neural_network_forward.1} parent=1 // pred_check
      _
    $region3: #{neural_network_forward.1} parent=1 // pred_check_branch
      %22 = sbr.rel (0) target = $region5
    $region4: #{neural_network_forward.1} parent=1 // pred_region
      _
    $region5: #{neural_network_forward.1} parent=1 // pred_fallthru
      _
    // Predicated region
    $region6: #{neural_network_forward.1} parent=1 // pred_check
      _
    $region7: #{neural_network_forward.1} parent=1 // pred_check_branch
      %24 = sbr.rel (0) target = $region9
    $region8: #{neural_network_forward.1} parent=1 // pred_region
      _
    $region9: #{neural_network_forward.1} parent=1 // pred_fallthru
      _
    // Predicated region
    $region10: #{neural_network_forward.1} parent=1 // pred_check
      _
    $region11: #{neural_network_forward.1} parent=1 // pred_check_branch
      %26 = sbr.rel (0) target = $region13
    $region12: #{neural_network_forward.1} parent=1 // pred_region
      %s28 = ssub.s32 19200, 19200
      %29 = vsyncadd [#allocation3], %s28
      %s30 = sshll.u32 [#allocation2], 4
      %s31 = int_to_ptr.vmem [resolvable:$true] %s30
      %36 = dma.hbm_to_vmem [thread:$0]  %s2, 19200, %s31, [#allocation3], 256, 256, 16
    $region13: #{neural_network_forward.1} parent=1 // pred_fallthru
      _
    // Predicated region
    $region14: #{neural_network_forward.1} parent=1 // pred_check
      _
    $region15: #{neural_network_forward.1} parent=1 // pred_check_branch
      %38 = sbr.rel (0) target = $region17
    $region16: #{neural_network_forward.1} parent=1 // pred_region
      _
    $region17: #{neural_network_forward.1} parent=1 // pred_fallthru
      _
    // Predicated region
    $region18: #{neural_network_forward.1} parent=1 // pred_check
      _
    $region19: #{neural_network_forward.1} parent=1 // pred_check_branch
      %40 = sbr.rel (0) target = $region21
    $region20: #{neural_network_forward.1} parent=1 // pred_region
      %s42 = ssub.s32 8192, 8192
      %43 = vsyncadd [#allocation6], %s42
      %s44 = sshll.u32 [#allocation5], 4
      %s45 = int_to_ptr.vmem [resolvable:$true] %s44
      %50 = dma.hbm_to_vmem [thread:$0]  %s4, 8192, %s45, [#allocation6], 128, 128, 8
    $region21: #{neural_network_forward.1} parent=1 // pred_fallthru
      _
    // Predicated region
    $region22: #{neural_network_forward.1} parent=1 // pred_check
      _
    $region23: #{neural_network_forward.1} parent=1 // pred_check_branch
      %52 = sbr.rel (0) target = $region25
    $region24: #{neural_network_forward.1} parent=1 // pred_region
      _
    $region25: #{neural_network_forward.1} parent=1 // pred_fallthru
      _
    // Predicated region
    $region26: #{neural_network_forward.1} parent=1 // pred_check
      _
    $region27: #{neural_network_forward.1} parent=1 // pred_check_branch
      %54 = sbr.rel (0) target = $region29
    $region28: #{neural_network_forward.1} parent=1 // pred_region
      %s56 = ssub.s32 2048, 2048
      %57 = vsyncadd [#allocation6], %s56
      %s58 = sshll.u32 [#allocation7], 4
      %s59 = int_to_ptr.vmem [resolvable:$true] %s58
      %64 = dma.hbm_to_vmem [thread:$0]  %s6, 2048, %s59, [#allocation6], 64, 64, 4
    $region29: #{neural_network_forward.1} parent=1 // pred_fallthru
      _
    // Predicated region
    $region30: #{neural_network_forward.1} parent=1 // pred_check
      _
    $region31: #{neural_network_forward.1} parent=1 // pred_check_branch
      %66 = sbr.rel (0) target = $region33
    $region32: #{neural_network_forward.1} parent=1 // pred_region
      _
    $region33: #{neural_network_forward.1} parent=1 // pred_fallthru
      _
    // Predicated region
    $region34: #{neural_network_forward.1} parent=1 // pred_check
      _
    $region35: #{neural_network_forward.1} parent=1 // pred_check_branch
      %68 = sbr.rel (0) target = $region37
    $region36: #{neural_network_forward.1} parent=1 // pred_region
      %s70 = ssub.s32 6144, 6144
      %71 = vsyncadd [#allocation9], %s70
      %s72 = sshll.u32 [#allocation8], 4
      %s73 = int_to_ptr.vmem [resolvable:$true] %s72
      %78 = dma.hbm_to_vmem [thread:$0]  %s8, 6144, %s73, [#allocation9], 384, 384, 24
    $region37: #{neural_network_forward.1} parent=1 // pred_fallthru
      _
    // Predicated region
    $region38: #{neural_network_forward.1} parent=1 // pred_check
      _
    $region39: #{neural_network_forward.1} parent=1 // pred_check_branch
      %80 = sbr.rel (0) target = $region41
    $region40: #{neural_network_forward.1} parent=1 // pred_region
      _
    $region41: #{neural_network_forward.1} parent=1 // pred_fallthru
      _
    // Predicated region
    $region42: #{neural_network_forward.1} parent=1 // pred_check
      _
    $region43: #{neural_network_forward.1} parent=1 // pred_check_branch
      %82 = sbr.rel (0) target = $region45
    $region44: #{neural_network_forward.1} parent=1 // pred_region
      %83 = dma.done [#allocation3], 19200
    $region45: #{neural_network_forward.1} parent=1 // pred_fallthru
      _
    // Predicated region
    $region46: #{neural_network_forward.1} parent=1 // pred_check
      _
    $region47: #{neural_network_forward.1} parent=1 // pred_check_branch
      %85 = sbr.rel (0) target = $region49
    $region48: #{neural_network_forward.1} parent=1 // pred_region
      %86 = dma.done [#allocation6], 8192
    $region49: #{neural_network_forward.1} parent=1 // pred_fallthru
      _
    // Predicated region
    $region50: #{neural_network_forward.1} parent=1 // pred_check
      _
    $region51: #{neural_network_forward.1} parent=1 // pred_check_branch
      %88 = sbr.rel (0) target = $region53
    $region52: #{neural_network_forward.1} parent=1 // pred_region
      %89 = dma.done [#allocation6], 2048
    $region53: #{neural_network_forward.1} parent=1 // pred_fallthru
      _
    // Predicated region
    $region54: #{neural_network_forward.1} parent=1 // pred_check
      _
    $region55: #{neural_network_forward.1} parent=1 // pred_check_branch
      %91 = sbr.rel (0) target = $region57
    $region56: #{neural_network_forward.1} parent=1 // pred_region
      %92 = dma.done [#allocation9], 6144
    $region57: #{neural_network_forward.1} parent=1 // pred_fallthru
      _
    %v94 = vld [vmem:[%s0] sm:$0xff]
    %v95 = vld [vmem:[%s0 + $0x8] sm:$0xff]
    %v96 = vld [vmem:[%s0 + $0x10] sm:$0xff]
    %v97 = vld [vmem:[%s0 + $0x18] sm:$0xff]
    %v98 = vld [vmem:[%s0 + $0x20] sm:$0xff]
    %v99 = vpack.c.bf16 %v94, %v94
    %v100 = vpack.c.bf16 %v95, %v95
    %v101 = vpack.c.bf16 %v96, %v96
    %v102 = vpack.c.bf16 %v97, %v97
    %v103 = vpack.c.bf16 %v98, %v98
    %v104 = vld [vmem:[#allocation2] sm:$0xff]
    %v105 = vld [vmem:[#allocation2 + $0x8] sm:$0xff]
    %v106 = vld [vmem:[#allocation2 + $0x10] sm:$0xff]
    %v107 = vld [vmem:[#allocation2 + $0x18] sm:$0xff]
    %v108 = vld [vmem:[#allocation2 + $0x20] sm:$0xff]
    %v109 = vld [vmem:[#allocation2 + $0x28] sm:$0xff]
    %v110 = vld [vmem:[#allocation2 + $0x30] sm:$0xff]
    %v111 = vld [vmem:[#allocation2 + $0x38] sm:$0xff]
    %v112 = vld [vmem:[#allocation2 + $0x40] sm:$0xff]
    %v113 = vld [vmem:[#allocation2 + $0x48] sm:$0xff]
    %v114 = vld [vmem:[#allocation2 + $0x50] sm:$0xff]
    %v115 = vld [vmem:[#allocation2 + $0x58] sm:$0xff]
    %v116 = vld [vmem:[#allocation2 + $0x60] sm:$0xff]
    %v117 = vld [vmem:[#allocation2 + $0x68] sm:$0xff]
    %v118 = vld [vmem:[#allocation2 + $0x70] sm:$0xff]
    %v119 = vld [vmem:[#allocation2 + $0x78] sm:$0xff]
    %v120 = vld [vmem:[#allocation2 + $0x80] sm:$0xff]
    %v121 = vld [vmem:[#allocation2 + $0x88] sm:$0xff]
    %v122 = vld [vmem:[#allocation2 + $0x90] sm:$0xff]
    %v123 = vld [vmem:[#allocation2 + $0x98] sm:$0xff]
    %v124 = vld [vmem:[#allocation2 + $0xa0] sm:$0xff]
    %v125 = vld [vmem:[#allocation2 + $0xa8] sm:$0xff]
    %v126 = vld [vmem:[#allocation2 + $0xb0] sm:$0xff]
    %v127 = vld [vmem:[#allocation2 + $0xb8] sm:$0xff]
    %v128 = vld [vmem:[#allocation2 + $0xc0] sm:$0xff]
    %v129 = vld [vmem:[#allocation2 + $0xc8] sm:$0xff]
    %v130 = vld [vmem:[#allocation2 + $0xd0] sm:$0xff]
    %v131 = vld [vmem:[#allocation2 + $0xd8] sm:$0xff]
    %v132 = vld [vmem:[#allocation2 + $0xe0] sm:$0xff]
    %v133 = vld [vmem:[#allocation2 + $0xe8] sm:$0xff]
    %v134 = vld [vmem:[#allocation2 + $0xf0] sm:$0xff]
    %v135 = vld [vmem:[#allocation2 + $0xf8] sm:$0xff]
    %v136 = vld [vmem:[#allocation2 + $0x100] sm:$0xff]
    %v137 = vld [vmem:[#allocation2 + $0x108] sm:$0xff]
    %v138 = vld [vmem:[#allocation2 + $0x110] sm:$0xff]
    %v139 = vld [vmem:[#allocation2 + $0x118] sm:$0xff]
    %v140 = vld [vmem:[#allocation2 + $0x120] sm:$0xff]
    %v141 = vld [vmem:[#allocation2 + $0x128] sm:$0xff]
    %v142 = vld [vmem:[#allocation2 + $0x130] sm:$0xff]
    %v143 = vld [vmem:[#allocation2 + $0x138] sm:$0xff]
    %v144 = vld [vmem:[#allocation2 + $0x140] sm:$0xff]
    %v145 = vld [vmem:[#allocation2 + $0x148] sm:$0xff]
    %v146 = vld [vmem:[#allocation2 + $0x150] sm:$0xff]
    %v147 = vld [vmem:[#allocation2 + $0x158] sm:$0xff]
    %v148 = vld [vmem:[#allocation2 + $0x160] sm:$0xff]
    %v149 = vld [vmem:[#allocation2 + $0x168] sm:$0xff]
    %v150 = vld [vmem:[#allocation2 + $0x170] sm:$0xff]
    %v151 = vld [vmem:[#allocation2 + $0x178] sm:$0xff]
    %v152 = vld [vmem:[#allocation2 + $0x180] sm:$0xff]
    %v153 = vld [vmem:[#allocation2 + $0x188] sm:$0xff]
    %v154 = vld [vmem:[#allocation2 + $0x190] sm:$0xff]
    %v155 = vld [vmem:[#allocation2 + $0x198] sm:$0xff]
    %v156 = vld [vmem:[#allocation2 + $0x1a0] sm:$0xff]
    %v157 = vld [vmem:[#allocation2 + $0x1a8] sm:$0xff]
    %v158 = vld [vmem:[#allocation2 + $0x1b0] sm:$0xff]
    %v159 = vld [vmem:[#allocation2 + $0x1b8] sm:$0xff]
    %v160 = vld [vmem:[#allocation2 + $0x1c0] sm:$0xff]
    %v161 = vld [vmem:[#allocation2 + $0x1c8] sm:$0xff]
    %v162 = vld [vmem:[#allocation2 + $0x1d0] sm:$0xff]
    %v163 = vld [vmem:[#allocation2 + $0x1d8] sm:$0xff]
    %v164 = vld [vmem:[#allocation2 + $0x1e0] sm:$0xff]
    %v165 = vld [vmem:[#allocation2 + $0x1e8] sm:$0xff]
    %v166 = vld [vmem:[#allocation2 + $0x1f0] sm:$0xff]
    %v167 = vld [vmem:[#allocation2 + $0x1f8] sm:$0xff]
    %v168 = vld [vmem:[#allocation2 + $0x200] sm:$0xff]
    %v169 = vld [vmem:[#allocation2 + $0x208] sm:$0xff]
    %v170 = vld [vmem:[#allocation2 + $0x210] sm:$0xff]
    %v171 = vld [vmem:[#allocation2 + $0x218] sm:$0xff]
    %v172 = vld [vmem:[#allocation2 + $0x220] sm:$0xff]
    %v173 = vld [vmem:[#allocation2 + $0x228] sm:$0xff]
    %v174 = vld [vmem:[#allocation2 + $0x230] sm:$0xff]
    %v175 = vld [vmem:[#allocation2 + $0x238] sm:$0xff]
    %v176 = vld [vmem:[#allocation2 + $0x240] sm:$0xff]
    %v177 = vld [vmem:[#allocation2 + $0x248] sm:$0xff]
    %v178 = vld [vmem:[#allocation2 + $0x250] sm:$0xff]
    %v179 = vld [vmem:[#allocation2 + $0x258] sm:$0xff]
    %v180 = vld [vmem:[#allocation2 + $0x260] sm:$0xff]
    %v181 = vld [vmem:[#allocation2 + $0x268] sm:$0xff]
    %v182 = vld [vmem:[#allocation2 + $0x270] sm:$0xff]
    %v183 = vld [vmem:[#allocation2 + $0x278] sm:$0xff]
    %v184 = vld [vmem:[#allocation2 + $0x280] sm:$0xff]
    %v185 = vld [vmem:[#allocation2 + $0x288] sm:$0xff]
    %v186 = vld [vmem:[#allocation2 + $0x290] sm:$0xff]
    %v187 = vld [vmem:[#allocation2 + $0x298] sm:$0xff]
    %v188 = vld [vmem:[#allocation2 + $0x2a0] sm:$0xff]
    %v189 = vld [vmem:[#allocation2 + $0x2a8] sm:$0xff]
    %v190 = vld [vmem:[#allocation2 + $0x2b0] sm:$0xff]
    %v191 = vld [vmem:[#allocation2 + $0x2b8] sm:$0xff]
    %v192 = vld [vmem:[#allocation2 + $0x2c0] sm:$0xff]
    %v193 = vld [vmem:[#allocation2 + $0x2c8] sm:$0xff]
    %v194 = vld [vmem:[#allocation2 + $0x2d0] sm:$0xff]
    %v195 = vld [vmem:[#allocation2 + $0x2d8] sm:$0xff]
    %v196 = vld [vmem:[#allocation2 + $0x2e0] sm:$0xff]
    %v197 = vld [vmem:[#allocation2 + $0x2e8] sm:$0xff]
    %v198 = vld [vmem:[#allocation2 + $0x2f0] sm:$0xff]
    %v199 = vld [vmem:[#allocation2 + $0x2f8] sm:$0xff]
    %v200 = vld [vmem:[#allocation2 + $0x300] sm:$0xff]
    %v201 = vld [vmem:[#allocation2 + $0x308] sm:$0xff]
    %v202 = vld [vmem:[#allocation2 + $0x310] sm:$0xff]
    %v203 = vld [vmem:[#allocation2 + $0x318] sm:$0xff]
    %v204 = vld [vmem:[#allocation2 + $0x320] sm:$0xff]
    %v205 = vld [vmem:[#allocation2 + $0x328] sm:$0xff]
    %v206 = vld [vmem:[#allocation2 + $0x330] sm:$0xff]
    %v207 = vld [vmem:[#allocation2 + $0x338] sm:$0xff]
    %v208 = vld [vmem:[#allocation2 + $0x340] sm:$0xff]
    %v209 = vld [vmem:[#allocation2 + $0x348] sm:$0xff]
    %v210 = vld [vmem:[#allocation2 + $0x350] sm:$0xff]
    %v211 = vld [vmem:[#allocation2 + $0x358] sm:$0xff]
    %v212 = vld [vmem:[#allocation2 + $0x360] sm:$0xff]
    %v213 = vld [vmem:[#allocation2 + $0x368] sm:$0xff]
    %v214 = vld [vmem:[#allocation2 + $0x370] sm:$0xff]
    %v215 = vld [vmem:[#allocation2 + $0x378] sm:$0xff]
    %v216 = vld [vmem:[#allocation2 + $0x380] sm:$0xff]
    %v217 = vld [vmem:[#allocation2 + $0x388] sm:$0xff]
    %v218 = vld [vmem:[#allocation2 + $0x390] sm:$0xff]
    %v219 = vld [vmem:[#allocation2 + $0x398] sm:$0xff]
    %v220 = vld [vmem:[#allocation2 + $0x3a0] sm:$0xff]
    %v221 = vld [vmem:[#allocation2 + $0x3a8] sm:$0xff]
    %v222 = vld [vmem:[#allocation2 + $0x3b0] sm:$0xff]
    %v223 = vld [vmem:[#allocation2 + $0x3b8] sm:$0xff]
    %v224 = vld [vmem:[#allocation2 + $0x3c0] sm:$0xff]
    %v225 = vld [vmem:[#allocation2 + $0x3c8] sm:$0xff]
    %v226 = vld [vmem:[#allocation2 + $0x3d0] sm:$0xff]
    %v227 = vld [vmem:[#allocation2 + $0x3d8] sm:$0xff]
    %v228 = vld [vmem:[#allocation2 + $0x3e0] sm:$0xff]
    %v229 = vld [vmem:[#allocation2 + $0x3e8] sm:$0xff]
    %v230 = vld [vmem:[#allocation2 + $0x3f0] sm:$0xff]
    %v231 = vld [vmem:[#allocation2 + $0x3f8] sm:$0xff]
    %v232 = vld [vmem:[#allocation2 + $0x400] sm:$0xff]
    %v233 = vld [vmem:[#allocation2 + $0x408] sm:$0xff]
    %v234 = vld [vmem:[#allocation2 + $0x410] sm:$0xff]
    %v235 = vld [vmem:[#allocation2 + $0x418] sm:$0xff]
    %v236 = vld [vmem:[#allocation2 + $0x420] sm:$0xff]
    %v237 = vld [vmem:[#allocation2 + $0x428] sm:$0xff]
    %v238 = vld [vmem:[#allocation2 + $0x430] sm:$0xff]
    %v239 = vld [vmem:[#allocation2 + $0x438] sm:$0xff]
    %v240 = vld [vmem:[#allocation2 + $0x440] sm:$0xff]
    %v241 = vld [vmem:[#allocation2 + $0x448] sm:$0xff]
    %v242 = vld [vmem:[#allocation2 + $0x450] sm:$0xff]
    %v243 = vld [vmem:[#allocation2 + $0x458] sm:$0xff]
    %v244 = vld [vmem:[#allocation2 + $0x460] sm:$0xff]
    %v245 = vld [vmem:[#allocation2 + $0x468] sm:$0xff]
    %v246 = vld [vmem:[#allocation2 + $0x470] sm:$0xff]
    %v247 = vld [vmem:[#allocation2 + $0x478] sm:$0xff]
    %v248 = vld [vmem:[#allocation2 + $0x480] sm:$0xff]
    %v249 = vld [vmem:[#allocation2 + $0x488] sm:$0xff]
    %v250 = vld [vmem:[#allocation2 + $0x490] sm:$0xff]
    %v251 = vld [vmem:[#allocation2 + $0x498] sm:$0xff]
    %v252 = vld [vmem:[#allocation2 + $0x4a0] sm:$0xff]
    %v253 = vld [vmem:[#allocation2 + $0x4a8] sm:$0xff]
    %v254 = vld [vmem:[%s3] sm:$0xf]
    %v256 = vlaneseq
    %v257 = vshrl.u32 %v256, 7
    %v258 = vsub.s32 0, %v257
    %v259 = vrot.slane %v254, %v258
    %v260 = vlaneseq
    %v261 = vshrl.u32 %v260, 7
    %v262 = vsub.s32 1, %v261
    %v263 = vrot.slane %v254, %v262
    %v264 = vlaneseq
    %v265 = vshrl.u32 %v264, 7
    %v266 = vsub.s32 2, %v265
    %v267 = vrot.slane %v254, %v266
    %v268 = vlaneseq
    %v269 = vshrl.u32 %v268, 7
    %v270 = vsub.s32 3, %v269
    %v271 = vrot.slane %v254, %v270
    %v426 = vunpack.c.l.b16 %v104
    %v427 = vunpack.c.h.b16 %v104
    %v428 = vunpack.c.l.b16 %v105
    %v429 = vunpack.c.h.b16 %v105
    %v430 = vunpack.c.l.b16 %v106
    %v431 = vunpack.c.h.b16 %v106
    %v432 = vunpack.c.l.b16 %v107
    %v433 = vunpack.c.h.b16 %v107
    %v434 = vunpack.c.l.b16 %v108
    %v435 = vunpack.c.h.b16 %v108
    %v436 = vunpack.c.l.b16 %v109
    %v437 = vunpack.c.h.b16 %v109
    %v438 = vunpack.c.l.b16 %v110
    %v439 = vunpack.c.h.b16 %v110
    %v440 = vunpack.c.l.b16 %v111
    %v441 = vunpack.c.h.b16 %v111
    %v442 = vunpack.c.l.b16 %v112
    %v443 = vunpack.c.h.b16 %v112
    %v444 = vunpack.c.l.b16 %v113
    %v445 = vunpack.c.h.b16 %v113
    %v446 = vunpack.c.l.b16 %v114
    %v447 = vunpack.c.h.b16 %v114
    %v448 = vunpack.c.l.b16 %v115
    %v449 = vunpack.c.h.b16 %v115
    %v450 = vunpack.c.l.b16 %v116
    %v451 = vunpack.c.h.b16 %v116
    %v452 = vunpack.c.l.b16 %v117
    %v453 = vunpack.c.h.b16 %v117
    %v454 = vunpack.c.l.b16 %v118
    %v455 = vunpack.c.h.b16 %v118
    %v456 = vunpack.c.l.b16 %v119
    %v457 = vunpack.c.h.b16 %v119
    %v458 = vunpack.c.l.b16 %v120
    %v459 = vunpack.c.h.b16 %v120
    %v460 = vunpack.c.l.b16 %v121
    %v461 = vunpack.c.h.b16 %v121
    %v462 = vunpack.c.l.b16 %v122
    %v463 = vunpack.c.h.b16 %v122
    %v464 = vunpack.c.l.b16 %v123
    %v465 = vunpack.c.h.b16 %v123
    %v466 = vunpack.c.l.b16 %v124
    %v467 = vunpack.c.h.b16 %v124
    %v468 = vunpack.c.l.b16 %v125
    %v469 = vunpack.c.h.b16 %v125
    %v470 = vunpack.c.l.b16 %v126
    %v471 = vunpack.c.h.b16 %v126
    %v472 = vunpack.c.l.b16 %v127
    %v473 = vunpack.c.h.b16 %v127
    %v474 = vunpack.c.l.b16 %v128
    %v475 = vunpack.c.h.b16 %v128
    %v476 = vunpack.c.l.b16 %v129
    %v477 = vunpack.c.h.b16 %v129
    %v478 = vunpack.c.l.b16 %v130
    %v479 = vunpack.c.h.b16 %v130
    %v480 = vunpack.c.l.b16 %v131
    %v481 = vunpack.c.h.b16 %v131
    %v482 = vunpack.c.l.b16 %v132
    %v483 = vunpack.c.h.b16 %v132
    %v484 = vunpack.c.l.b16 %v133
    %v485 = vunpack.c.h.b16 %v133
    %v486 = vunpack.c.l.b16 %v134
    %v487 = vunpack.c.h.b16 %v134
    %v488 = vunpack.c.l.b16 %v135
    %v489 = vunpack.c.h.b16 %v135
    %v490 = vunpack.c.l.b16 %v136
    %v491 = vunpack.c.h.b16 %v136
    %v492 = vunpack.c.l.b16 %v137
    %v493 = vunpack.c.h.b16 %v137
    %v494 = vunpack.c.l.b16 %v138
    %v495 = vunpack.c.h.b16 %v138
    %v496 = vunpack.c.l.b16 %v139
    %v497 = vunpack.c.h.b16 %v139
    %v498 = vunpack.c.l.b16 %v140
    %v499 = vunpack.c.h.b16 %v140
    %v500 = vunpack.c.l.b16 %v141
    %v501 = vunpack.c.h.b16 %v141
    %v502 = vunpack.c.l.b16 %v142
    %v503 = vunpack.c.h.b16 %v142
    %v504 = vunpack.c.l.b16 %v143
    %v505 = vunpack.c.h.b16 %v143
    %v506 = vunpack.c.l.b16 %v144
    %v507 = vunpack.c.h.b16 %v144
    %v508 = vunpack.c.l.b16 %v145
    %v509 = vunpack.c.h.b16 %v145
    %v510 = vunpack.c.l.b16 %v146
    %v511 = vunpack.c.h.b16 %v146
    %v512 = vunpack.c.l.b16 %v147
    %v513 = vunpack.c.h.b16 %v147
    %v514 = vunpack.c.l.b16 %v148
    %v515 = vunpack.c.h.b16 %v148
    %v516 = vunpack.c.l.b16 %v149
    %v517 = vunpack.c.h.b16 %v149
    %v518 = vunpack.c.l.b16 %v150
    %v519 = vunpack.c.h.b16 %v150
    %v520 = vunpack.c.l.b16 %v151
    %v521 = vunpack.c.h.b16 %v151
    %v522 = vunpack.c.l.b16 %v152
    %v523 = vunpack.c.h.b16 %v152
    %v524 = vunpack.c.l.b16 %v153
    %v525 = vunpack.c.h.b16 %v153
    %v526 = vunpack.c.l.b16 %v154
    %v527 = vunpack.c.h.b16 %v154
    %v528 = vunpack.c.l.b16 %v155
    %v529 = vunpack.c.h.b16 %v155
    %v530 = vunpack.c.l.b16 %v156
    %v531 = vunpack.c.h.b16 %v156
    %v532 = vunpack.c.l.b16 %v157
    %v533 = vunpack.c.h.b16 %v157
    %v534 = vunpack.c.l.b16 %v158
    %v535 = vunpack.c.h.b16 %v158
    %v536 = vunpack.c.l.b16 %v159
    %v537 = vunpack.c.h.b16 %v159
    %v538 = vunpack.c.l.b16 %v160
    %v539 = vunpack.c.h.b16 %v160
    %v540 = vunpack.c.l.b16 %v161
    %v541 = vunpack.c.h.b16 %v161
    %v542 = vunpack.c.l.b16 %v162
    %v543 = vunpack.c.h.b16 %v162
    %v544 = vunpack.c.l.b16 %v163
    %v545 = vunpack.c.h.b16 %v163
    %v546 = vunpack.c.l.b16 %v164
    %v547 = vunpack.c.h.b16 %v164
    %v548 = vunpack.c.l.b16 %v165
    %v549 = vunpack.c.h.b16 %v165
    %v550 = vunpack.c.l.b16 %v166
    %v551 = vunpack.c.h.b16 %v166
    %v552 = vunpack.c.l.b16 %v167
    %v553 = vunpack.c.h.b16 %v167
    %v554 = vunpack.c.l.b16 %v168
    %v555 = vunpack.c.h.b16 %v168
    %v556 = vunpack.c.l.b16 %v169
    %v557 = vunpack.c.h.b16 %v169
    %v558 = vunpack.c.l.b16 %v170
    %v559 = vunpack.c.h.b16 %v170
    %v560 = vunpack.c.l.b16 %v171
    %v561 = vunpack.c.h.b16 %v171
    %v562 = vunpack.c.l.b16 %v172
    %v563 = vunpack.c.h.b16 %v172
    %v564 = vunpack.c.l.b16 %v173
    %v565 = vunpack.c.h.b16 %v173
    %v566 = vunpack.c.l.b16 %v174
    %v567 = vunpack.c.h.b16 %v174
    %v568 = vunpack.c.l.b16 %v175
    %v569 = vunpack.c.h.b16 %v175
    %v570 = vunpack.c.l.b16 %v176
    %v571 = vunpack.c.h.b16 %v176
    %v572 = vunpack.c.l.b16 %v177
    %v573 = vunpack.c.h.b16 %v177
    %v574 = vunpack.c.l.b16 %v178
    %v575 = vunpack.c.h.b16 %v178
    %v576 = vunpack.c.l.b16 %v179
    %v577 = vunpack.c.h.b16 %v179
    %v578 = vunpack.c.l.b16 %v180
    %v579 = vunpack.c.h.b16 %v180
    %v580 = vunpack.c.l.b16 %v181
    %v581 = vunpack.c.h.b16 %v181
    %v582 = vunpack.c.l.b16 %v182
    %v583 = vunpack.c.h.b16 %v182
    %v584 = vunpack.c.l.b16 %v183
    %v585 = vunpack.c.h.b16 %v183
    %v586 = vunpack.c.l.b16 %v184
    %v587 = vunpack.c.h.b16 %v184
    %v588 = vunpack.c.l.b16 %v185
    %v589 = vunpack.c.h.b16 %v185
    %v590 = vunpack.c.l.b16 %v186
    %v591 = vunpack.c.h.b16 %v186
    %v592 = vunpack.c.l.b16 %v187
    %v593 = vunpack.c.h.b16 %v187
    %v594 = vunpack.c.l.b16 %v188
    %v595 = vunpack.c.h.b16 %v188
    %v596 = vunpack.c.l.b16 %v189
    %v597 = vunpack.c.h.b16 %v189
    %v598 = vunpack.c.l.b16 %v190
    %v599 = vunpack.c.h.b16 %v190
    %v600 = vunpack.c.l.b16 %v191
    %v601 = vunpack.c.h.b16 %v191
    %v602 = vunpack.c.l.b16 %v192
    %v603 = vunpack.c.h.b16 %v192
    %v604 = vunpack.c.l.b16 %v193
    %v605 = vunpack.c.h.b16 %v193
    %v606 = vunpack.c.l.b16 %v194
    %v607 = vunpack.c.h.b16 %v194
    %v608 = vunpack.c.l.b16 %v195
    %v609 = vunpack.c.h.b16 %v195
    %v610 = vunpack.c.l.b16 %v196
    %v611 = vunpack.c.h.b16 %v196
    %v612 = vunpack.c.l.b16 %v197
    %v613 = vunpack.c.h.b16 %v197
    %v614 = vunpack.c.l.b16 %v198
    %v615 = vunpack.c.h.b16 %v198
    %v616 = vunpack.c.l.b16 %v199
    %v617 = vunpack.c.h.b16 %v199
    %v618 = vunpack.c.l.b16 %v200
    %v619 = vunpack.c.h.b16 %v200
    %v620 = vunpack.c.l.b16 %v201
    %v621 = vunpack.c.h.b16 %v201
    %v622 = vunpack.c.l.b16 %v202
    %v623 = vunpack.c.h.b16 %v202
    %v624 = vunpack.c.l.b16 %v203
    %v625 = vunpack.c.h.b16 %v203
    %v626 = vunpack.c.l.b16 %v204
    %v627 = vunpack.c.h.b16 %v204
    %v628 = vunpack.c.l.b16 %v205
    %v629 = vunpack.c.h.b16 %v205
    %v630 = vunpack.c.l.b16 %v206
    %v631 = vunpack.c.h.b16 %v206
    %v632 = vunpack.c.l.b16 %v207
    %v633 = vunpack.c.h.b16 %v207
    %v634 = vunpack.c.l.b16 %v208
    %v635 = vunpack.c.h.b16 %v208
    %v636 = vunpack.c.l.b16 %v209
    %v637 = vunpack.c.h.b16 %v209
    %v638 = vunpack.c.l.b16 %v210
    %v639 = vunpack.c.h.b16 %v210
    %v640 = vunpack.c.l.b16 %v211
    %v641 = vunpack.c.h.b16 %v211
    %v642 = vunpack.c.l.b16 %v212
    %v643 = vunpack.c.h.b16 %v212
    %v644 = vunpack.c.l.b16 %v213
    %v645 = vunpack.c.h.b16 %v213
    %v646 = vunpack.c.l.b16 %v214
    %v647 = vunpack.c.h.b16 %v214
    %v648 = vunpack.c.l.b16 %v215
    %v649 = vunpack.c.h.b16 %v215
    %v650 = vunpack.c.l.b16 %v216
    %v651 = vunpack.c.h.b16 %v216
    %v652 = vunpack.c.l.b16 %v217
    %v653 = vunpack.c.h.b16 %v217
    %v654 = vunpack.c.l.b16 %v218
    %v655 = vunpack.c.h.b16 %v218
    %v656 = vunpack.c.l.b16 %v219
    %v657 = vunpack.c.h.b16 %v219
    %v658 = vunpack.c.l.b16 %v220
    %v659 = vunpack.c.h.b16 %v220
    %v660 = vunpack.c.l.b16 %v221
    %v661 = vunpack.c.h.b16 %v221
    %v662 = vunpack.c.l.b16 %v222
    %v663 = vunpack.c.h.b16 %v222
    %v664 = vunpack.c.l.b16 %v223
    %v665 = vunpack.c.h.b16 %v223
    %v666 = vunpack.c.l.b16 %v224
    %v667 = vunpack.c.h.b16 %v224
    %v668 = vunpack.c.l.b16 %v225
    %v669 = vunpack.c.h.b16 %v225
    %v670 = vunpack.c.l.b16 %v226
    %v671 = vunpack.c.h.b16 %v226
    %v672 = vunpack.c.l.b16 %v227
    %v673 = vunpack.c.h.b16 %v227
    %v674 = vunpack.c.l.b16 %v228
    %v675 = vunpack.c.h.b16 %v228
    %v676 = vunpack.c.l.b16 %v229
    %v677 = vunpack.c.h.b16 %v229
    %v678 = vunpack.c.l.b16 %v230
    %v679 = vunpack.c.h.b16 %v230
    %v680 = vunpack.c.l.b16 %v231
    %v681 = vunpack.c.h.b16 %v231
    %v682 = vunpack.c.l.b16 %v232
    %v683 = vunpack.c.h.b16 %v232
    %v684 = vunpack.c.l.b16 %v233
    %v685 = vunpack.c.h.b16 %v233
    %v686 = vunpack.c.l.b16 %v234
    %v687 = vunpack.c.h.b16 %v234
    %v688 = vunpack.c.l.b16 %v235
    %v689 = vunpack.c.h.b16 %v235
    %v690 = vunpack.c.l.b16 %v236
    %v691 = vunpack.c.h.b16 %v236
    %v692 = vunpack.c.l.b16 %v237
    %v693 = vunpack.c.h.b16 %v237
    %v694 = vunpack.c.l.b16 %v238
    %v695 = vunpack.c.h.b16 %v238
    %v696 = vunpack.c.l.b16 %v239
    %v697 = vunpack.c.h.b16 %v239
    %v698 = vunpack.c.l.b16 %v240
    %v699 = vunpack.c.h.b16 %v240
    %v700 = vunpack.c.l.b16 %v241
    %v701 = vunpack.c.h.b16 %v241
    %v702 = vunpack.c.l.b16 %v242
    %v703 = vunpack.c.h.b16 %v242
    %v704 = vunpack.c.l.b16 %v243
    %v705 = vunpack.c.h.b16 %v243
    %v706 = vunpack.c.l.b16 %v244
    %v707 = vunpack.c.h.b16 %v244
    %v708 = vunpack.c.l.b16 %v245
    %v709 = vunpack.c.h.b16 %v245
    %v710 = vunpack.c.l.b16 %v246
    %v711 = vunpack.c.h.b16 %v246
    %v712 = vunpack.c.l.b16 %v247
    %v713 = vunpack.c.h.b16 %v247
    %v714 = vunpack.c.l.b16 %v248
    %v715 = vunpack.c.h.b16 %v248
    %v716 = vunpack.c.l.b16 %v249
    %v717 = vunpack.c.h.b16 %v249
    %v718 = vunpack.c.l.b16 %v250
    %v719 = vunpack.c.h.b16 %v250
    %v720 = vunpack.c.l.b16 %v251
    %v721 = vunpack.c.h.b16 %v251
    %v722 = vunpack.c.l.b16 %v252
    %v723 = vunpack.c.h.b16 %v252
    %v724 = vunpack.c.l.b16 %v253
    %v725 = vunpack.c.h.b16 %v253
    %v726 = vpack.c.b16 %v430, %v426
    %v727 = vpack.c.b16 %v431, %v427
    %v728 = vpack.c.b16 %v432, %v428
    %v729 = vpack.c.b16 %v433, %v429
    %v730 = vpack.c.b16 %v438, %v434
    %v731 = vpack.c.b16 %v439, %v435
    %v732 = vpack.c.b16 %v440, %v436
    %v733 = vpack.c.b16 %v441, %v437
    %v734 = vpack.c.b16 %v446, %v442
    %v735 = vpack.c.b16 %v447, %v443
    %v736 = vpack.c.b16 %v448, %v444
    %v737 = vpack.c.b16 %v449, %v445
    %v738 = vpack.c.b16 %v454, %v450
    %v739 = vpack.c.b16 %v455, %v451
    %v740 = vpack.c.b16 %v456, %v452
    %v741 = vpack.c.b16 %v457, %v453
    %v742 = vpack.c.b16 %v462, %v458
    %v743 = vpack.c.b16 %v463, %v459
    %v744 = vpack.c.b16 %v464, %v460
    %v745 = vpack.c.b16 %v465, %v461
    %v746 = vpack.c.b16 %v470, %v466
    %v747 = vpack.c.b16 %v471, %v467
    %v748 = vpack.c.b16 %v472, %v468
    %v749 = vpack.c.b16 %v473, %v469
    %v750 = vpack.c.b16 %v478, %v474
    %v751 = vpack.c.b16 %v479, %v475
    %v752 = vpack.c.b16 %v480, %v476
    %v753 = vpack.c.b16 %v481, %v477
    %v754 = vpack.c.b16 %v486, %v482
    %v755 = vpack.c.b16 %v487, %v483
    %v756 = vpack.c.b16 %v488, %v484
    %v757 = vpack.c.b16 %v489, %v485
    %v758 = vpack.c.b16 %v494, %v490
    %v759 = vpack.c.b16 %v495, %v491
    %v760 = vpack.c.b16 %v496, %v492
    %v761 = vpack.c.b16 %v497, %v493
    %v762 = vpack.c.b16 %v502, %v498
    %v763 = vpack.c.b16 %v503, %v499
    %v764 = vpack.c.b16 %v504, %v500
    %v765 = vpack.c.b16 %v505, %v501
    %v766 = vpack.c.b16 %v510, %v506
    %v767 = vpack.c.b16 %v511, %v507
    %v768 = vpack.c.b16 %v512, %v508
    %v769 = vpack.c.b16 %v513, %v509
    %v770 = vpack.c.b16 %v518, %v514
    %v771 = vpack.c.b16 %v519, %v515
    %v772 = vpack.c.b16 %v520, %v516
    %v773 = vpack.c.b16 %v521, %v517
    %v774 = vpack.c.b16 %v526, %v522
    %v775 = vpack.c.b16 %v527, %v523
    %v776 = vpack.c.b16 %v528, %v524
    %v777 = vpack.c.b16 %v529, %v525
    %v778 = vpack.c.b16 %v534, %v530
    %v779 = vpack.c.b16 %v535, %v531
    %v780 = vpack.c.b16 %v536, %v532
    %v781 = vpack.c.b16 %v537, %v533
    %v782 = vpack.c.b16 %v542, %v538
    %v783 = vpack.c.b16 %v543, %v539
    %v784 = vpack.c.b16 %v544, %v540
    %v785 = vpack.c.b16 %v545, %v541
    %v786 = vpack.c.b16 %v550, %v546
    %v787 = vpack.c.b16 %v551, %v547
    %v788 = vpack.c.b16 %v552, %v548
    %v789 = vpack.c.b16 %v553, %v549
    %v790 = vpack.c.b16 %v558, %v554
    %v791 = vpack.c.b16 %v559, %v555
    %v792 = vpack.c.b16 %v560, %v556
    %v793 = vpack.c.b16 %v561, %v557
    %v794 = vpack.c.b16 %v566, %v562
    %v795 = vpack.c.b16 %v567, %v563
    %v796 = vpack.c.b16 %v568, %v564
    %v797 = vpack.c.b16 %v569, %v565
    %v798 = vpack.c.b16 %v574, %v570
    %v799 = vpack.c.b16 %v575, %v571
    %v800 = vpack.c.b16 %v576, %v572
    %v801 = vpack.c.b16 %v577, %v573
    %v802 = vpack.c.b16 %v582, %v578
    %v803 = vpack.c.b16 %v583, %v579
    %v804 = vpack.c.b16 %v584, %v580
    %v805 = vpack.c.b16 %v585, %v581
    %v806 = vpack.c.b16 %v590, %v586
    %v807 = vpack.c.b16 %v591, %v587
    %v808 = vpack.c.b16 %v592, %v588
    %v809 = vpack.c.b16 %v593, %v589
    %v810 = vpack.c.b16 %v598, %v594
    %v811 = vpack.c.b16 %v599, %v595
    %v812 = vpack.c.b16 %v600, %v596
    %v813 = vpack.c.b16 %v601, %v597
    %v814 = vpack.c.b16 %v606, %v602
    %v815 = vpack.c.b16 %v607, %v603
    %v816 = vpack.c.b16 %v608, %v604
    %v817 = vpack.c.b16 %v609, %v605
    %v818 = vpack.c.b16 %v614, %v610
    %v819 = vpack.c.b16 %v615, %v611
    %v820 = vpack.c.b16 %v616, %v612
    %v821 = vpack.c.b16 %v617, %v613
    %v822 = vpack.c.b16 %v622, %v618
    %v823 = vpack.c.b16 %v623, %v619
    %v824 = vpack.c.b16 %v624, %v620
    %v825 = vpack.c.b16 %v625, %v621
    %v826 = vpack.c.b16 %v630, %v626
    %v827 = vpack.c.b16 %v631, %v627
    %v828 = vpack.c.b16 %v632, %v628
    %v829 = vpack.c.b16 %v633, %v629
    %v830 = vpack.c.b16 %v638, %v634
    %v831 = vpack.c.b16 %v639, %v635
    %v832 = vpack.c.b16 %v640, %v636
    %v833 = vpack.c.b16 %v641, %v637
    %v834 = vpack.c.b16 %v646, %v642
    %v835 = vpack.c.b16 %v647, %v643
    %v836 = vpack.c.b16 %v648, %v644
    %v837 = vpack.c.b16 %v649, %v645
    %v838 = vpack.c.b16 %v654, %v650
    %v839 = vpack.c.b16 %v655, %v651
    %v840 = vpack.c.b16 %v656, %v652
    %v841 = vpack.c.b16 %v657, %v653
    %v842 = vpack.c.b16 %v662, %v658
    %v843 = vpack.c.b16 %v663, %v659
    %v844 = vpack.c.b16 %v664, %v660
    %v845 = vpack.c.b16 %v665, %v661
    %v846 = vpack.c.b16 %v670, %v666
    %v847 = vpack.c.b16 %v671, %v667
    %v848 = vpack.c.b16 %v672, %v668
    %v849 = vpack.c.b16 %v673, %v669
    %v850 = vpack.c.b16 %v678, %v674
    %v851 = vpack.c.b16 %v679, %v675
    %v852 = vpack.c.b16 %v680, %v676
    %v853 = vpack.c.b16 %v681, %v677
    %v854 = vpack.c.b16 %v686, %v682
    %v855 = vpack.c.b16 %v687, %v683
    %v856 = vpack.c.b16 %v688, %v684
    %v857 = vpack.c.b16 %v689, %v685
    %v858 = vpack.c.b16 %v694, %v690
    %v859 = vpack.c.b16 %v695, %v691
    %v860 = vpack.c.b16 %v696, %v692
    %v861 = vpack.c.b16 %v697, %v693
    %v862 = vpack.c.b16 %v702, %v698
    %v863 = vpack.c.b16 %v703, %v699
    %v864 = vpack.c.b16 %v704, %v700
    %v865 = vpack.c.b16 %v705, %v701
    %v866 = vpack.c.b16 %v710, %v706
    %v867 = vpack.c.b16 %v711, %v707
    %v868 = vpack.c.b16 %v712, %v708
    %v869 = vpack.c.b16 %v713, %v709
    %v870 = vpack.c.b16 %v718, %v714
    %v871 = vpack.c.b16 %v719, %v715
    %v872 = vpack.c.b16 %v720, %v716
    %v873 = vpack.c.b16 %v721, %v717
    %v874 = vpack.c.b16 %v722, %v722
    %v875 = vpack.c.b16 %v723, %v723
    %v876 = vpack.c.b16 %v724, %v724
    %v877 = vpack.c.b16 %v725, %v725
    %vm1026 = vcmask 719872
    %v1028 = vsel %vm1026, %v103, 0
    %vm1030 = vcmask 1043456
    %v1032 = vsel %vm1030, %v874, 0
    %v1035 = vsel %vm1030, %v875, 0
    %v1038 = vsel %vm1030, %v876, 0
    %v1041 = vsel %vm1030, %v877, 0
    %1043 = vmatprep.subr.bf16.mxu0 %v727
    %1044 = vmatpush1.bf16.msra.mxu0 %v726
    %1045 = vmatprep.subr.bf16.mxu0 %v731
    %1046 = vmatpush1.bf16.msra.mxu0 %v730
    %1047 = vmatprep.subr.bf16.mxu0 %v735
    %1048 = vmatpush1.bf16.msra.mxu0 %v734
    %1049 = vmatprep.subr.bf16.mxu0 %v739
    %1050 = vmatpush1.bf16.msra.mxu0 %v738
    %1051 = vmatprep.subr.bf16.mxu0 %v743
    %1052 = vmatpush1.bf16.msra.mxu0 %v742
    %1053 = vmatprep.subr.bf16.mxu0 %v747
    %1054 = vmatpush1.bf16.msra.mxu0 %v746
    %1055 = vmatprep.subr.bf16.mxu0 %v751
    %1056 = vmatpush1.bf16.msra.mxu0 %v750
    %1057 = vmatprep.subr.bf16.mxu0 %v755
    %1058 = vmatpush1.bf16.msra.mxu0 %v754
    %1059 = vmatprep.subr.bf16.mxu0 %v759
    %1060 = vmatpush1.bf16.msra.mxu0 %v758
    %1061 = vmatprep.subr.bf16.mxu0 %v763
    %1062 = vmatpush1.bf16.msra.mxu0 %v762
    %1063 = vmatprep.subr.bf16.mxu0 %v767
    %1064 = vmatpush1.bf16.msra.mxu0 %v766
    %1065 = vmatprep.subr.bf16.mxu0 %v771
    %1066 = vmatpush1.bf16.msra.mxu0 %v770
    %1067 = vmatprep.subr.bf16.mxu0 %v775
    %1068 = vmatpush1.bf16.msra.mxu0 %v774
    %1069 = vmatprep.subr.bf16.mxu0 %v779
    %1070 = vmatpush1.bf16.msra.mxu0 %v778
    %1071 = vmatprep.subr.bf16.mxu0 %v783
    %1072 = vmatpush1.bf16.msra.mxu0 %v782
    %1073 = vmatprep.subr.bf16.mxu0 %v787
    %1074 = vmatpush1.bf16.msra.mxu0 %v786
    %1075 = vmatprep.mubr.bf16.mxu0 %v100
    %1076 = vmatmul.mubr.bf16.gmra.mrb[0].mxu0 %v99
    %v1077 = vpop.f32.mrb[0].mxu0
    %v1078 = vadd.f32 %v259, %v1077
    %v1079 = vpop.f32.mrb[0].mxu0
    %v1080 = vadd.f32 %v263, %v1079
    %v1081 = vpop.f32.mrb[0].mxu0
    %v1082 = vpop.f32.mrb[0].mxu0
    %1083 = vdwg.mxu0
    %1084 = vmatprep.subr.bf16.mxu0 %v791
    %1085 = vmatpush1.bf16.msra.mxu0 %v790
    %1086 = vmatprep.subr.bf16.mxu0 %v795
    %1087 = vmatpush1.bf16.msra.mxu0 %v794
    %1088 = vmatprep.subr.bf16.mxu0 %v799
    %1089 = vmatpush1.bf16.msra.mxu0 %v798
    %1090 = vmatprep.subr.bf16.mxu0 %v803
    %1091 = vmatpush1.bf16.msra.mxu0 %v802
    %1092 = vmatprep.subr.bf16.mxu0 %v807
    %1093 = vmatpush1.bf16.msra.mxu0 %v806
    %1094 = vmatprep.subr.bf16.mxu0 %v811
    %1095 = vmatpush1.bf16.msra.mxu0 %v810
    %1096 = vmatprep.subr.bf16.mxu0 %v815
    %1097 = vmatpush1.bf16.msra.mxu0 %v814
    %1098 = vmatprep.subr.bf16.mxu0 %v819
    %1099 = vmatpush1.bf16.msra.mxu0 %v818
    %1100 = vmatprep.subr.bf16.mxu0 %v823
    %1101 = vmatpush1.bf16.msra.mxu0 %v822
    %1102 = vmatprep.subr.bf16.mxu0 %v827
    %1103 = vmatpush1.bf16.msra.mxu0 %v826
    %1104 = vmatprep.subr.bf16.mxu0 %v831
    %1105 = vmatpush1.bf16.msra.mxu0 %v830
    %1106 = vmatprep.subr.bf16.mxu0 %v835
    %1107 = vmatpush1.bf16.msra.mxu0 %v834
    %1108 = vmatprep.subr.bf16.mxu0 %v839
    %1109 = vmatpush1.bf16.msra.mxu0 %v838
    %1110 = vmatprep.subr.bf16.mxu0 %v843
    %1111 = vmatpush1.bf16.msra.mxu0 %v842
    %1112 = vmatprep.subr.bf16.mxu0 %v847
    %1113 = vmatpush1.bf16.msra.mxu0 %v846
    %1114 = vmatprep.subr.bf16.mxu0 %v851
    %1115 = vmatpush1.bf16.msra.mxu0 %v850
    %1116 = vmatprep.mubr.bf16.mxu0 %v102
    %1117 = vmatmul.mubr.bf16.gmra.mrb[0].mxu0 %v101
    %v1118 = vpop.f32.mrb[0].mxu0
    %v1119 = vadd.f32 %v1078, %v1118
    %v1120 = vpop.f32.mrb[0].mxu0
    %v1121 = vadd.f32 %v1080, %v1120
    %v1122 = vpop.f32.mrb[0].mxu0
    %v1123 = vpop.f32.mrb[0].mxu0
    %1124 = vdwg.mxu0
    %1125 = vmatprep.subr.bf16.mxu0 %v855
    %1126 = vmatpush1.bf16.msra.mxu0 %v854
    %1127 = vmatprep.subr.bf16.mxu0 %v859
    %1128 = vmatpush1.bf16.msra.mxu0 %v858
    %1129 = vmatprep.subr.bf16.mxu0 %v863
    %1130 = vmatpush1.bf16.msra.mxu0 %v862
    %1131 = vmatprep.subr.bf16.mxu0 %v867
    %1132 = vmatpush1.bf16.msra.mxu0 %v866
    %1133 = vmatprep.subr.bf16.mxu0 %v871
    %1134 = vmatpush1.bf16.msra.mxu0 %v870
    %1135 = vmatprep.subr.bf16.mxu0 %v1035
    %1136 = vmatpush1.bf16.msra.mxu0 %v1032
    %1137 = vmatprep.subr.bf16.mxu0 0
    %1138 = vmatpush1.bf16.msra.mxu0 0
    %1139 = vmatprep.subr.bf16.mxu0 0
    %1140 = vmatpush1.bf16.msra.mxu0 0
    %1141 = vmatprep.subr.bf16.mxu0 0
    %1142 = vmatpush1.bf16.msra.mxu0 0
    %1143 = vmatprep.subr.bf16.mxu0 0
    %1144 = vmatpush1.bf16.msra.mxu0 0
    %1145 = vmatprep.subr.bf16.mxu0 0
    %1146 = vmatpush1.bf16.msra.mxu0 0
    %1147 = vmatprep.subr.bf16.mxu0 0
    %1148 = vmatpush1.bf16.msra.mxu0 0
    %1149 = vmatprep.subr.bf16.mxu0 0
    %1150 = vmatpush1.bf16.msra.mxu0 0
    %1151 = vmatprep.subr.bf16.mxu0 0
    %1152 = vmatpush1.bf16.msra.mxu0 0
    %1153 = vmatprep.subr.bf16.mxu0 0
    %1154 = vmatpush1.bf16.msra.mxu0 0
    %1155 = vmatprep.subr.bf16.mxu0 0
    %1156 = vmatpush1.bf16.msra.mxu0 0
    %1157 = vmatprep.mubr.bf16.mxu0 0
    %1158 = vmatmul.mubr.bf16.gmra.mrb[0].mxu0 %v1028
    %v1159 = vpop.f32.mrb[0].mxu0
    %v1160 = vadd.f32 %v1119, %v1159
    %v1161 = vpop.f32.mrb[0].mxu0
    %v1162 = vadd.f32 %v1121, %v1161
    %v1163 = vpop.f32.mrb[0].mxu0
    %v1164 = vpop.f32.mrb[0].mxu0
    %1165 = vdwg.mxu0
    %1166 = vmatprep.subr.bf16.mxu0 %v729
    %1167 = vmatpush1.bf16.msra.mxu0 %v728
    %1168 = vmatprep.subr.bf16.mxu0 %v733
    %1169 = vmatpush1.bf16.msra.mxu0 %v732
    %1170 = vmatprep.subr.bf16.mxu0 %v737
    %1171 = vmatpush1.bf16.msra.mxu0 %v736
    %1172 = vmatprep.subr.bf16.mxu0 %v741
    %1173 = vmatpush1.bf16.msra.mxu0 %v740
    %1174 = vmatprep.subr.bf16.mxu0 %v745
    %1175 = vmatpush1.bf16.msra.mxu0 %v744
    %1176 = vmatprep.subr.bf16.mxu0 %v749
    %1177 = vmatpush1.bf16.msra.mxu0 %v748
    %1178 = vmatprep.subr.bf16.mxu0 %v753
    %1179 = vmatpush1.bf16.msra.mxu0 %v752
    %1180 = vmatprep.subr.bf16.mxu0 %v757
    %1181 = vmatpush1.bf16.msra.mxu0 %v756
    %1182 = vmatprep.subr.bf16.mxu0 %v761
    %1183 = vmatpush1.bf16.msra.mxu0 %v760
    %1184 = vmatprep.subr.bf16.mxu0 %v765
    %1185 = vmatpush1.bf16.msra.mxu0 %v764
    %1186 = vmatprep.subr.bf16.mxu0 %v769
    %1187 = vmatpush1.bf16.msra.mxu0 %v768
    %1188 = vmatprep.subr.bf16.mxu0 %v773
    %1189 = vmatpush1.bf16.msra.mxu0 %v772
    %1190 = vmatprep.subr.bf16.mxu0 %v777
    %1191 = vmatpush1.bf16.msra.mxu0 %v776
    %1192 = vmatprep.subr.bf16.mxu0 %v781
    %1193 = vmatpush1.bf16.msra.mxu0 %v780
    %1194 = vmatprep.subr.bf16.mxu0 %v785
    %1195 = vmatpush1.bf16.msra.mxu0 %v784
    %1196 = vmatprep.subr.bf16.mxu0 %v789
    %1197 = vmatpush1.bf16.msra.mxu0 %v788
    %1198 = vmatprep.mubr.bf16.mxu0 %v100
    %1199 = vmatmul.mubr.bf16.gmra.mrb[0].mxu0 %v99
    %v1200 = vpop.f32.mrb[0].mxu0
    %v1201 = vadd.f32 %v267, %v1200
    %v1202 = vpop.f32.mrb[0].mxu0
    %v1203 = vadd.f32 %v271, %v1202
    %v1204 = vpop.f32.mrb[0].mxu0
    %v1205 = vpop.f32.mrb[0].mxu0
    %1206 = vdwg.mxu0
    %1207 = vmatprep.subr.bf16.mxu0 %v793
    %1208 = vmatpush1.bf16.msra.mxu0 %v792
    %1209 = vmatprep.subr.bf16.mxu0 %v797
    %1210 = vmatpush1.bf16.msra.mxu0 %v796
    %1211 = vmatprep.subr.bf16.mxu0 %v801
    %1212 = vmatpush1.bf16.msra.mxu0 %v800
    %1213 = vmatprep.subr.bf16.mxu0 %v805
    %1214 = vmatpush1.bf16.msra.mxu0 %v804
    %1215 = vmatprep.subr.bf16.mxu0 %v809
    %1216 = vmatpush1.bf16.msra.mxu0 %v808
    %1217 = vmatprep.subr.bf16.mxu0 %v813
    %1218 = vmatpush1.bf16.msra.mxu0 %v812
    %1219 = vmatprep.subr.bf16.mxu0 %v817
    %1220 = vmatpush1.bf16.msra.mxu0 %v816
    %1221 = vmatprep.subr.bf16.mxu0 %v821
    %1222 = vmatpush1.bf16.msra.mxu0 %v820
    %1223 = vmatprep.subr.bf16.mxu0 %v825
    %1224 = vmatpush1.bf16.msra.mxu0 %v824
    %1225 = vmatprep.subr.bf16.mxu0 %v829
    %1226 = vmatpush1.bf16.msra.mxu0 %v828
    %1227 = vmatprep.subr.bf16.mxu0 %v833
    %1228 = vmatpush1.bf16.msra.mxu0 %v832
    %1229 = vmatprep.subr.bf16.mxu0 %v837
    %1230 = vmatpush1.bf16.msra.mxu0 %v836
    %1231 = vmatprep.subr.bf16.mxu0 %v841
    %1232 = vmatpush1.bf16.msra.mxu0 %v840
    %1233 = vmatprep.subr.bf16.mxu0 %v845
    %1234 = vmatpush1.bf16.msra.mxu0 %v844
    %1235 = vmatprep.subr.bf16.mxu0 %v849
    %1236 = vmatpush1.bf16.msra.mxu0 %v848
    %1237 = vmatprep.subr.bf16.mxu0 %v853
    %1238 = vmatpush1.bf16.msra.mxu0 %v852
    %1239 = vmatprep.mubr.bf16.mxu0 %v102
    %1240 = vmatmul.mubr.bf16.gmra.mrb[0].mxu0 %v101
    %v1241 = vpop.f32.mrb[0].mxu0
    %v1242 = vadd.f32 %v1201, %v1241
    %v1243 = vpop.f32.mrb[0].mxu0
    %v1244 = vadd.f32 %v1203, %v1243
    %v1245 = vpop.f32.mrb[0].mxu0
    %v1246 = vpop.f32.mrb[0].mxu0
    %1247 = vdwg.mxu0
    %1248 = vmatprep.subr.bf16.mxu0 %v857
    %1249 = vmatpush1.bf16.msra.mxu0 %v856
    %1250 = vmatprep.subr.bf16.mxu0 %v861
    %1251 = vmatpush1.bf16.msra.mxu0 %v860
    %1252 = vmatprep.subr.bf16.mxu0 %v865
    %1253 = vmatpush1.bf16.msra.mxu0 %v864
    %1254 = vmatprep.subr.bf16.mxu0 %v869
    %1255 = vmatpush1.bf16.msra.mxu0 %v868
    %1256 = vmatprep.subr.bf16.mxu0 %v873
    %1257 = vmatpush1.bf16.msra.mxu0 %v872
    %1258 = vmatprep.subr.bf16.mxu0 %v1041
    %1259 = vmatpush1.bf16.msra.mxu0 %v1038
    %1260 = vmatprep.subr.bf16.mxu0 0
    %1261 = vmatpush1.bf16.msra.mxu0 0
    %1262 = vmatprep.subr.bf16.mxu0 0
    %1263 = vmatpush1.bf16.msra.mxu0 0
    %1264 = vmatprep.subr.bf16.mxu0 0
    %1265 = vmatpush1.bf16.msra.mxu0 0
    %1266 = vmatprep.subr.bf16.mxu0 0
    %1267 = vmatpush1.bf16.msra.mxu0 0
    %1268 = vmatprep.subr.bf16.mxu0 0
    %1269 = vmatpush1.bf16.msra.mxu0 0
    %1270 = vmatprep.subr.bf16.mxu0 0
    %1271 = vmatpush1.bf16.msra.mxu0 0
    %1272 = vmatprep.subr.bf16.mxu0 0
    %1273 = vmatpush1.bf16.msra.mxu0 0
    %1274 = vmatprep.subr.bf16.mxu0 0
    %1275 = vmatpush1.bf16.msra.mxu0 0
    %1276 = vmatprep.subr.bf16.mxu0 0
    %1277 = vmatpush1.bf16.msra.mxu0 0
    %1278 = vmatprep.subr.bf16.mxu0 0
    %1279 = vmatpush1.bf16.msra.mxu0 0
    %1280 = vmatprep.mubr.bf16.mxu0 0
    %1281 = vmatmul.mubr.bf16.gmra.mrb[0].mxu0 %v1028
    %v1282 = vpop.f32.mrb[0].mxu0
    %v1283 = vadd.f32 %v1242, %v1282
    %v1284 = vpop.f32.mrb[0].mxu0
    %v1285 = vadd.f32 %v1244, %v1284
    %v1286 = vpop.f32.mrb[0].mxu0
    %v1287 = vpop.f32.mrb[0].mxu0
    %1288 = vdwg.mxu0
    %v1289 = vmax.f32 %v1160, 0.0
    %v1290 = vmax.f32 %v1162, 0.0
    %v1291 = vmax.f32 %v1283, 0.0
    %v1292 = vmax.f32 %v1285, 0.0
    %v1293 = vpack.c.bf16 %v1289, %v1289
    %v1294 = vpack.c.bf16 %v1290, %v1290
    %v1295 = vpack.c.bf16 %v1291, %v1291
    %v1296 = vpack.c.bf16 %v1292, %v1292
    %v1297 = vld [vmem:[#allocation5] sm:$0xff]
    %v1298 = vld [vmem:[#allocation5 + $0x8] sm:$0xff]
    %v1299 = vld [vmem:[#allocation5 + $0x10] sm:$0xff]
    %v1300 = vld [vmem:[#allocation5 + $0x18] sm:$0xff]
    %v1301 = vld [vmem:[#allocation5 + $0x20] sm:$0xff]
    %v1302 = vld [vmem:[#allocation5 + $0x28] sm:$0xff]
    %v1303 = vld [vmem:[#allocation5 + $0x30] sm:$0xff]
    %v1304 = vld [vmem:[#allocation5 + $0x38] sm:$0xff]
    %v1305 = vld [vmem:[#allocation5 + $0x40] sm:$0xff]
    %v1306 = vld [vmem:[#allocation5 + $0x48] sm:$0xff]
    %v1307 = vld [vmem:[#allocation5 + $0x50] sm:$0xff]
    %v1308 = vld [vmem:[#allocation5 + $0x58] sm:$0xff]
    %v1309 = vld [vmem:[#allocation5 + $0x60] sm:$0xff]
    %v1310 = vld [vmem:[#allocation5 + $0x68] sm:$0xff]
    %v1311 = vld [vmem:[#allocation5 + $0x70] sm:$0xff]
    %v1312 = vld [vmem:[#allocation5 + $0x78] sm:$0xff]
    %v1313 = vld [vmem:[#allocation5 + $0x80] sm:$0xff]
    %v1314 = vld [vmem:[#allocation5 + $0x88] sm:$0xff]
    %v1315 = vld [vmem:[#allocation5 + $0x90] sm:$0xff]
    %v1316 = vld [vmem:[#allocation5 + $0x98] sm:$0xff]
    %v1317 = vld [vmem:[#allocation5 + $0xa0] sm:$0xff]
    %v1318 = vld [vmem:[#allocation5 + $0xa8] sm:$0xff]
    %v1319 = vld [vmem:[#allocation5 + $0xb0] sm:$0xff]
    %v1320 = vld [vmem:[#allocation5 + $0xb8] sm:$0xff]
    %v1321 = vld [vmem:[#allocation5 + $0xc0] sm:$0xff]
    %v1322 = vld [vmem:[#allocation5 + $0xc8] sm:$0xff]
    %v1323 = vld [vmem:[#allocation5 + $0xd0] sm:$0xff]
    %v1324 = vld [vmem:[#allocation5 + $0xd8] sm:$0xff]
    %v1325 = vld [vmem:[#allocation5 + $0xe0] sm:$0xff]
    %v1326 = vld [vmem:[#allocation5 + $0xe8] sm:$0xff]
    %v1327 = vld [vmem:[#allocation5 + $0xf0] sm:$0xff]
    %v1328 = vld [vmem:[#allocation5 + $0xf8] sm:$0xff]
    %v1329 = vld [vmem:[#allocation5 + $0x100] sm:$0xff]
    %v1330 = vld [vmem:[#allocation5 + $0x108] sm:$0xff]
    %v1331 = vld [vmem:[#allocation5 + $0x110] sm:$0xff]
    %v1332 = vld [vmem:[#allocation5 + $0x118] sm:$0xff]
    %v1333 = vld [vmem:[#allocation5 + $0x120] sm:$0xff]
    %v1334 = vld [vmem:[#allocation5 + $0x128] sm:$0xff]
    %v1335 = vld [vmem:[#allocation5 + $0x130] sm:$0xff]
    %v1336 = vld [vmem:[#allocation5 + $0x138] sm:$0xff]
    %v1337 = vld [vmem:[#allocation5 + $0x140] sm:$0xff]
    %v1338 = vld [vmem:[#allocation5 + $0x148] sm:$0xff]
    %v1339 = vld [vmem:[#allocation5 + $0x150] sm:$0xff]
    %v1340 = vld [vmem:[#allocation5 + $0x158] sm:$0xff]
    %v1341 = vld [vmem:[#allocation5 + $0x160] sm:$0xff]
    %v1342 = vld [vmem:[#allocation5 + $0x168] sm:$0xff]
    %v1343 = vld [vmem:[#allocation5 + $0x170] sm:$0xff]
    %v1344 = vld [vmem:[#allocation5 + $0x178] sm:$0xff]
    %v1345 = vld [vmem:[#allocation5 + $0x180] sm:$0xff]
    %v1346 = vld [vmem:[#allocation5 + $0x188] sm:$0xff]
    %v1347 = vld [vmem:[#allocation5 + $0x190] sm:$0xff]
    %v1348 = vld [vmem:[#allocation5 + $0x198] sm:$0xff]
    %v1349 = vld [vmem:[#allocation5 + $0x1a0] sm:$0xff]
    %v1350 = vld [vmem:[#allocation5 + $0x1a8] sm:$0xff]
    %v1351 = vld [vmem:[#allocation5 + $0x1b0] sm:$0xff]
    %v1352 = vld [vmem:[#allocation5 + $0x1b8] sm:$0xff]
    %v1353 = vld [vmem:[#allocation5 + $0x1c0] sm:$0xff]
    %v1354 = vld [vmem:[#allocation5 + $0x1c8] sm:$0xff]
    %v1355 = vld [vmem:[#allocation5 + $0x1d0] sm:$0xff]
    %v1356 = vld [vmem:[#allocation5 + $0x1d8] sm:$0xff]
    %v1357 = vld [vmem:[#allocation5 + $0x1e0] sm:$0xff]
    %v1358 = vld [vmem:[#allocation5 + $0x1e8] sm:$0xff]
    %v1359 = vld [vmem:[#allocation5 + $0x1f0] sm:$0xff]
    %v1360 = vld [vmem:[#allocation5 + $0x1f8] sm:$0xff]
    %v1361 = vld [vmem:[%s5] sm:$0x3]
    %v1363 = vlaneseq
    %v1364 = vshrl.u32 %v1363, 7
    %v1365 = vsub.s32 0, %v1364
    %v1366 = vrot.slane %v1361, %v1365
    %v1367 = vlaneseq
    %v1368 = vshrl.u32 %v1367, 7
    %v1369 = vsub.s32 1, %v1368
    %v1370 = vrot.slane %v1361, %v1369
    %v1437 = vunpack.c.l.b16 %v1297
    %v1438 = vunpack.c.h.b16 %v1297
    %v1439 = vunpack.c.l.b16 %v1298
    %v1440 = vunpack.c.h.b16 %v1298
    %v1441 = vunpack.c.l.b16 %v1299
    %v1442 = vunpack.c.h.b16 %v1299
    %v1443 = vunpack.c.l.b16 %v1300
    %v1444 = vunpack.c.h.b16 %v1300
    %v1445 = vunpack.c.l.b16 %v1301
    %v1446 = vunpack.c.h.b16 %v1301
    %v1447 = vunpack.c.l.b16 %v1302
    %v1448 = vunpack.c.h.b16 %v1302
    %v1449 = vunpack.c.l.b16 %v1303
    %v1450 = vunpack.c.h.b16 %v1303
    %v1451 = vunpack.c.l.b16 %v1304
    %v1452 = vunpack.c.h.b16 %v1304
    %v1453 = vunpack.c.l.b16 %v1305
    %v1454 = vunpack.c.h.b16 %v1305
    %v1455 = vunpack.c.l.b16 %v1306
    %v1456 = vunpack.c.h.b16 %v1306
    %v1457 = vunpack.c.l.b16 %v1307
    %v1458 = vunpack.c.h.b16 %v1307
    %v1459 = vunpack.c.l.b16 %v1308
    %v1460 = vunpack.c.h.b16 %v1308
    %v1461 = vunpack.c.l.b16 %v1309
    %v1462 = vunpack.c.h.b16 %v1309
    %v1463 = vunpack.c.l.b16 %v1310
    %v1464 = vunpack.c.h.b16 %v1310
    %v1465 = vunpack.c.l.b16 %v1311
    %v1466 = vunpack.c.h.b16 %v1311
    %v1467 = vunpack.c.l.b16 %v1312
    %v1468 = vunpack.c.h.b16 %v1312
    %v1469 = vunpack.c.l.b16 %v1313
    %v1470 = vunpack.c.h.b16 %v1313
    %v1471 = vunpack.c.l.b16 %v1314
    %v1472 = vunpack.c.h.b16 %v1314
    %v1473 = vunpack.c.l.b16 %v1315
    %v1474 = vunpack.c.h.b16 %v1315
    %v1475 = vunpack.c.l.b16 %v1316
    %v1476 = vunpack.c.h.b16 %v1316
    %v1477 = vunpack.c.l.b16 %v1317
    %v1478 = vunpack.c.h.b16 %v1317
    %v1479 = vunpack.c.l.b16 %v1318
    %v1480 = vunpack.c.h.b16 %v1318
    %v1481 = vunpack.c.l.b16 %v1319
    %v1482 = vunpack.c.h.b16 %v1319
    %v1483 = vunpack.c.l.b16 %v1320
    %v1484 = vunpack.c.h.b16 %v1320
    %v1485 = vunpack.c.l.b16 %v1321
    %v1486 = vunpack.c.h.b16 %v1321
    %v1487 = vunpack.c.l.b16 %v1322
    %v1488 = vunpack.c.h.b16 %v1322
    %v1489 = vunpack.c.l.b16 %v1323
    %v1490 = vunpack.c.h.b16 %v1323
    %v1491 = vunpack.c.l.b16 %v1324
    %v1492 = vunpack.c.h.b16 %v1324
    %v1493 = vunpack.c.l.b16 %v1325
    %v1494 = vunpack.c.h.b16 %v1325
    %v1495 = vunpack.c.l.b16 %v1326
    %v1496 = vunpack.c.h.b16 %v1326
    %v1497 = vunpack.c.l.b16 %v1327
    %v1498 = vunpack.c.h.b16 %v1327
    %v1499 = vunpack.c.l.b16 %v1328
    %v1500 = vunpack.c.h.b16 %v1328
    %v1501 = vunpack.c.l.b16 %v1329
    %v1502 = vunpack.c.h.b16 %v1329
    %v1503 = vunpack.c.l.b16 %v1330
    %v1504 = vunpack.c.h.b16 %v1330
    %v1505 = vunpack.c.l.b16 %v1331
    %v1506 = vunpack.c.h.b16 %v1331
    %v1507 = vunpack.c.l.b16 %v1332
    %v1508 = vunpack.c.h.b16 %v1332
    %v1509 = vunpack.c.l.b16 %v1333
    %v1510 = vunpack.c.h.b16 %v1333
    %v1511 = vunpack.c.l.b16 %v1334
    %v1512 = vunpack.c.h.b16 %v1334
    %v1513 = vunpack.c.l.b16 %v1335
    %v1514 = vunpack.c.h.b16 %v1335
    %v1515 = vunpack.c.l.b16 %v1336
    %v1516 = vunpack.c.h.b16 %v1336
    %v1517 = vunpack.c.l.b16 %v1337
    %v1518 = vunpack.c.h.b16 %v1337
    %v1519 = vunpack.c.l.b16 %v1338
    %v1520 = vunpack.c.h.b16 %v1338
    %v1521 = vunpack.c.l.b16 %v1339
    %v1522 = vunpack.c.h.b16 %v1339
    %v1523 = vunpack.c.l.b16 %v1340
    %v1524 = vunpack.c.h.b16 %v1340
    %v1525 = vunpack.c.l.b16 %v1341
    %v1526 = vunpack.c.h.b16 %v1341
    %v1527 = vunpack.c.l.b16 %v1342
    %v1528 = vunpack.c.h.b16 %v1342
    %v1529 = vunpack.c.l.b16 %v1343
    %v1530 = vunpack.c.h.b16 %v1343
    %v1531 = vunpack.c.l.b16 %v1344
    %v1532 = vunpack.c.h.b16 %v1344
    %v1533 = vunpack.c.l.b16 %v1345
    %v1534 = vunpack.c.h.b16 %v1345
    %v1535 = vunpack.c.l.b16 %v1346
    %v1536 = vunpack.c.h.b16 %v1346
    %v1537 = vunpack.c.l.b16 %v1347
    %v1538 = vunpack.c.h.b16 %v1347
    %v1539 = vunpack.c.l.b16 %v1348
    %v1540 = vunpack.c.h.b16 %v1348
    %v1541 = vunpack.c.l.b16 %v1349
    %v1542 = vunpack.c.h.b16 %v1349
    %v1543 = vunpack.c.l.b16 %v1350
    %v1544 = vunpack.c.h.b16 %v1350
    %v1545 = vunpack.c.l.b16 %v1351
    %v1546 = vunpack.c.h.b16 %v1351
    %v1547 = vunpack.c.l.b16 %v1352
    %v1548 = vunpack.c.h.b16 %v1352
    %v1549 = vunpack.c.l.b16 %v1353
    %v1550 = vunpack.c.h.b16 %v1353
    %v1551 = vunpack.c.l.b16 %v1354
    %v1552 = vunpack.c.h.b16 %v1354
    %v1553 = vunpack.c.l.b16 %v1355
    %v1554 = vunpack.c.h.b16 %v1355
    %v1555 = vunpack.c.l.b16 %v1356
    %v1556 = vunpack.c.h.b16 %v1356
    %v1557 = vunpack.c.l.b16 %v1357
    %v1558 = vunpack.c.h.b16 %v1357
    %v1559 = vunpack.c.l.b16 %v1358
    %v1560 = vunpack.c.h.b16 %v1358
    %v1561 = vunpack.c.l.b16 %v1359
    %v1562 = vunpack.c.h.b16 %v1359
    %v1563 = vunpack.c.l.b16 %v1360
    %v1564 = vunpack.c.h.b16 %v1360
    %v1565 = vpack.c.b16 %v1439, %v1437
    %v1566 = vpack.c.b16 %v1440, %v1438
    %v1567 = vpack.c.b16 %v1443, %v1441
    %v1568 = vpack.c.b16 %v1444, %v1442
    %v1569 = vpack.c.b16 %v1447, %v1445
    %v1570 = vpack.c.b16 %v1448, %v1446
    %v1571 = vpack.c.b16 %v1451, %v1449
    %v1572 = vpack.c.b16 %v1452, %v1450
    %v1573 = vpack.c.b16 %v1455, %v1453
    %v1574 = vpack.c.b16 %v1456, %v1454
    %v1575 = vpack.c.b16 %v1459, %v1457
    %v1576 = vpack.c.b16 %v1460, %v1458
    %v1577 = vpack.c.b16 %v1463, %v1461
    %v1578 = vpack.c.b16 %v1464, %v1462
    %v1579 = vpack.c.b16 %v1467, %v1465
    %v1580 = vpack.c.b16 %v1468, %v1466
    %v1581 = vpack.c.b16 %v1471, %v1469
    %v1582 = vpack.c.b16 %v1472, %v1470
    %v1583 = vpack.c.b16 %v1475, %v1473
    %v1584 = vpack.c.b16 %v1476, %v1474
    %v1585 = vpack.c.b16 %v1479, %v1477
    %v1586 = vpack.c.b16 %v1480, %v1478
    %v1587 = vpack.c.b16 %v1483, %v1481
    %v1588 = vpack.c.b16 %v1484, %v1482
    %v1589 = vpack.c.b16 %v1487, %v1485
    %v1590 = vpack.c.b16 %v1488, %v1486
    %v1591 = vpack.c.b16 %v1491, %v1489
    %v1592 = vpack.c.b16 %v1492, %v1490
    %v1593 = vpack.c.b16 %v1495, %v1493
    %v1594 = vpack.c.b16 %v1496, %v1494
    %v1595 = vpack.c.b16 %v1499, %v1497
    %v1596 = vpack.c.b16 %v1500, %v1498
    %v1597 = vpack.c.b16 %v1503, %v1501
    %v1598 = vpack.c.b16 %v1504, %v1502
    %v1599 = vpack.c.b16 %v1507, %v1505
    %v1600 = vpack.c.b16 %v1508, %v1506
    %v1601 = vpack.c.b16 %v1511, %v1509
    %v1602 = vpack.c.b16 %v1512, %v1510
    %v1603 = vpack.c.b16 %v1515, %v1513
    %v1604 = vpack.c.b16 %v1516, %v1514
    %v1605 = vpack.c.b16 %v1519, %v1517
    %v1606 = vpack.c.b16 %v1520, %v1518
    %v1607 = vpack.c.b16 %v1523, %v1521
    %v1608 = vpack.c.b16 %v1524, %v1522
    %v1609 = vpack.c.b16 %v1527, %v1525
    %v1610 = vpack.c.b16 %v1528, %v1526
    %v1611 = vpack.c.b16 %v1531, %v1529
    %v1612 = vpack.c.b16 %v1532, %v1530
    %v1613 = vpack.c.b16 %v1535, %v1533
    %v1614 = vpack.c.b16 %v1536, %v1534
    %v1615 = vpack.c.b16 %v1539, %v1537
    %v1616 = vpack.c.b16 %v1540, %v1538
    %v1617 = vpack.c.b16 %v1543, %v1541
    %v1618 = vpack.c.b16 %v1544, %v1542
    %v1619 = vpack.c.b16 %v1547, %v1545
    %v1620 = vpack.c.b16 %v1548, %v1546
    %v1621 = vpack.c.b16 %v1551, %v1549
    %v1622 = vpack.c.b16 %v1552, %v1550
    %v1623 = vpack.c.b16 %v1555, %v1553
    %v1624 = vpack.c.b16 %v1556, %v1554
    %v1625 = vpack.c.b16 %v1559, %v1557
    %v1626 = vpack.c.b16 %v1560, %v1558
    %v1627 = vpack.c.b16 %v1563, %v1561
    %v1628 = vpack.c.b16 %v1564, %v1562
    %1693 = vmatprep.subr.bf16.mxu0 %v1566
    %1694 = vmatpush1.bf16.msra.mxu0 %v1565
    %1695 = vmatprep.subr.bf16.mxu0 %v1568
    %1696 = vmatpush1.bf16.msra.mxu0 %v1567
    %1697 = vmatprep.subr.bf16.mxu0 %v1570
    %1698 = vmatpush1.bf16.msra.mxu0 %v1569
    %1699 = vmatprep.subr.bf16.mxu0 %v1572
    %1700 = vmatpush1.bf16.msra.mxu0 %v1571
    %1701 = vmatprep.subr.bf16.mxu0 %v1574
    %1702 = vmatpush1.bf16.msra.mxu0 %v1573
    %1703 = vmatprep.subr.bf16.mxu0 %v1576
    %1704 = vmatpush1.bf16.msra.mxu0 %v1575
    %1705 = vmatprep.subr.bf16.mxu0 %v1578
    %1706 = vmatpush1.bf16.msra.mxu0 %v1577
    %1707 = vmatprep.subr.bf16.mxu0 %v1580
    %1708 = vmatpush1.bf16.msra.mxu0 %v1579
    %1709 = vmatprep.subr.bf16.mxu0 %v1582
    %1710 = vmatpush1.bf16.msra.mxu0 %v1581
    %1711 = vmatprep.subr.bf16.mxu0 %v1584
    %1712 = vmatpush1.bf16.msra.mxu0 %v1583
    %1713 = vmatprep.subr.bf16.mxu0 %v1586
    %1714 = vmatpush1.bf16.msra.mxu0 %v1585
    %1715 = vmatprep.subr.bf16.mxu0 %v1588
    %1716 = vmatpush1.bf16.msra.mxu0 %v1587
    %1717 = vmatprep.subr.bf16.mxu0 %v1590
    %1718 = vmatpush1.bf16.msra.mxu0 %v1589
    %1719 = vmatprep.subr.bf16.mxu0 %v1592
    %1720 = vmatpush1.bf16.msra.mxu0 %v1591
    %1721 = vmatprep.subr.bf16.mxu0 %v1594
    %1722 = vmatpush1.bf16.msra.mxu0 %v1593
    %1723 = vmatprep.subr.bf16.mxu0 %v1596
    %1724 = vmatpush1.bf16.msra.mxu0 %v1595
    %1725 = vmatprep.mubr.bf16.mxu0 %v1294
    %1726 = vmatmul.mubr.bf16.gmra.mrb[0].mxu0 %v1293
    %v1727 = vpop.f32.mrb[0].mxu0
    %v1728 = vadd.f32 %v1366, %v1727
    %v1729 = vpop.f32.mrb[0].mxu0
    %v1730 = vadd.f32 %v1370, %v1729
    %v1731 = vpop.f32.mrb[0].mxu0
    %v1732 = vpop.f32.mrb[0].mxu0
    %1733 = vdwg.mxu0
    %1734 = vmatprep.subr.bf16.mxu0 %v1598
    %1735 = vmatpush1.bf16.msra.mxu0 %v1597
    %1736 = vmatprep.subr.bf16.mxu0 %v1600
    %1737 = vmatpush1.bf16.msra.mxu0 %v1599
    %1738 = vmatprep.subr.bf16.mxu0 %v1602
    %1739 = vmatpush1.bf16.msra.mxu0 %v1601
    %1740 = vmatprep.subr.bf16.mxu0 %v1604
    %1741 = vmatpush1.bf16.msra.mxu0 %v1603
    %1742 = vmatprep.subr.bf16.mxu0 %v1606
    %1743 = vmatpush1.bf16.msra.mxu0 %v1605
    %1744 = vmatprep.subr.bf16.mxu0 %v1608
    %1745 = vmatpush1.bf16.msra.mxu0 %v1607
    %1746 = vmatprep.subr.bf16.mxu0 %v1610
    %1747 = vmatpush1.bf16.msra.mxu0 %v1609
    %1748 = vmatprep.subr.bf16.mxu0 %v1612
    %1749 = vmatpush1.bf16.msra.mxu0 %v1611
    %1750 = vmatprep.subr.bf16.mxu0 %v1614
    %1751 = vmatpush1.bf16.msra.mxu0 %v1613
    %1752 = vmatprep.subr.bf16.mxu0 %v1616
    %1753 = vmatpush1.bf16.msra.mxu0 %v1615
    %1754 = vmatprep.subr.bf16.mxu0 %v1618
    %1755 = vmatpush1.bf16.msra.mxu0 %v1617
    %1756 = vmatprep.subr.bf16.mxu0 %v1620
    %1757 = vmatpush1.bf16.msra.mxu0 %v1619
    %1758 = vmatprep.subr.bf16.mxu0 %v1622
    %1759 = vmatpush1.bf16.msra.mxu0 %v1621
    %1760 = vmatprep.subr.bf16.mxu0 %v1624
    %1761 = vmatpush1.bf16.msra.mxu0 %v1623
    %1762 = vmatprep.subr.bf16.mxu0 %v1626
    %1763 = vmatpush1.bf16.msra.mxu0 %v1625
    %1764 = vmatprep.subr.bf16.mxu0 %v1628
    %1765 = vmatpush1.bf16.msra.mxu0 %v1627
    %1766 = vmatprep.mubr.bf16.mxu0 %v1296
    %1767 = vmatmul.mubr.bf16.gmra.mrb[0].mxu0 %v1295
    %v1768 = vpop.f32.mrb[0].mxu0
    %v1769 = vadd.f32 %v1728, %v1768
    %v1770 = vpop.f32.mrb[0].mxu0
    %v1771 = vadd.f32 %v1730, %v1770
    %v1772 = vpop.f32.mrb[0].mxu0
    %v1773 = vpop.f32.mrb[0].mxu0
    %1774 = vdwg.mxu0
    %v1775 = vmax.f32 %v1769, 0.0
    %v1776 = vmax.f32 %v1771, 0.0
    %v1777 = vpack.c.bf16 %v1775, %v1775
    %v1778 = vpack.c.bf16 %v1776, %v1776
    %v1779 = vld [vmem:[#allocation7] sm:$0xf]
    %v1780 = vld [vmem:[#allocation7 + $0x4] sm:$0xf]
    %v1781 = vld [vmem:[#allocation7 + $0x8] sm:$0xf]
    %v1782 = vld [vmem:[#allocation7 + $0xc] sm:$0xf]
    %v1783 = vld [vmem:[#allocation7 + $0x10] sm:$0xf]
    %v1784 = vld [vmem:[#allocation7 + $0x14] sm:$0xf]
    %v1785 = vld [vmem:[#allocation7 + $0x18] sm:$0xf]
    %v1786 = vld [vmem:[#allocation7 + $0x1c] sm:$0xf]
    %v1787 = vld [vmem:[#allocation7 + $0x20] sm:$0xf]
    %v1788 = vld [vmem:[#allocation7 + $0x24] sm:$0xf]
    %v1789 = vld [vmem:[#allocation7 + $0x28] sm:$0xf]
    %v1790 = vld [vmem:[#allocation7 + $0x2c] sm:$0xf]
    %v1791 = vld [vmem:[#allocation7 + $0x30] sm:$0xf]
    %v1792 = vld [vmem:[#allocation7 + $0x34] sm:$0xf]
    %v1793 = vld [vmem:[#allocation7 + $0x38] sm:$0xf]
    %v1794 = vld [vmem:[#allocation7 + $0x3c] sm:$0xf]
    %v1795 = vld [vmem:[#allocation7 + $0x40] sm:$0xf]
    %v1796 = vld [vmem:[#allocation7 + $0x44] sm:$0xf]
    %v1797 = vld [vmem:[#allocation7 + $0x48] sm:$0xf]
    %v1798 = vld [vmem:[#allocation7 + $0x4c] sm:$0xf]
    %v1799 = vld [vmem:[#allocation7 + $0x50] sm:$0xf]
    %v1800 = vld [vmem:[#allocation7 + $0x54] sm:$0xf]
    %v1801 = vld [vmem:[#allocation7 + $0x58] sm:$0xf]
    %v1802 = vld [vmem:[#allocation7 + $0x5c] sm:$0xf]
    %v1803 = vld [vmem:[#allocation7 + $0x60] sm:$0xf]
    %v1804 = vld [vmem:[#allocation7 + $0x64] sm:$0xf]
    %v1805 = vld [vmem:[#allocation7 + $0x68] sm:$0xf]
    %v1806 = vld [vmem:[#allocation7 + $0x6c] sm:$0xf]
    %v1807 = vld [vmem:[#allocation7 + $0x70] sm:$0xf]
    %v1808 = vld [vmem:[#allocation7 + $0x74] sm:$0xf]
    %v1809 = vld [vmem:[#allocation7 + $0x78] sm:$0xf]
    %v1810 = vld [vmem:[#allocation7 + $0x7c] sm:$0xf]
    %v1811 = vld [vmem:[%s7] sm:$0x1]
    %v1813 = vlaneseq
    %v1814 = vshrl.u32 %v1813, 7
    %v1815 = vsub.s32 0, %v1814
    %v1816 = vrot.slane %v1811, %v1815
    %v1850 = vunpack.c.l.b16 %v1779
    %v1851 = vunpack.c.l.b16 %v1780
    %v1852 = vunpack.c.l.b16 %v1781
    %v1853 = vunpack.c.l.b16 %v1782
    %v1854 = vunpack.c.l.b16 %v1783
    %v1855 = vunpack.c.l.b16 %v1784
    %v1856 = vunpack.c.l.b16 %v1785
    %v1857 = vunpack.c.l.b16 %v1786
    %v1858 = vunpack.c.l.b16 %v1787
    %v1859 = vunpack.c.l.b16 %v1788
    %v1860 = vunpack.c.l.b16 %v1789
    %v1861 = vunpack.c.l.b16 %v1790
    %v1862 = vunpack.c.l.b16 %v1791
    %v1863 = vunpack.c.l.b16 %v1792
    %v1864 = vunpack.c.l.b16 %v1793
    %v1865 = vunpack.c.l.b16 %v1794
    %v1866 = vunpack.c.l.b16 %v1795
    %v1867 = vunpack.c.l.b16 %v1796
    %v1868 = vunpack.c.l.b16 %v1797
    %v1869 = vunpack.c.l.b16 %v1798
    %v1870 = vunpack.c.l.b16 %v1799
    %v1871 = vunpack.c.l.b16 %v1800
    %v1872 = vunpack.c.l.b16 %v1801
    %v1873 = vunpack.c.l.b16 %v1802
    %v1874 = vunpack.c.l.b16 %v1803
    %v1875 = vunpack.c.l.b16 %v1804
    %v1876 = vunpack.c.l.b16 %v1805
    %v1877 = vunpack.c.l.b16 %v1806
    %v1878 = vunpack.c.l.b16 %v1807
    %v1879 = vunpack.c.l.b16 %v1808
    %v1880 = vunpack.c.l.b16 %v1809
    %v1881 = vunpack.c.l.b16 %v1810
    %v1882 = vpack.c.b16 %v1851, %v1850
    %v1883 = vpack.c.b16 %v1853, %v1852
    %v1884 = vpack.c.b16 %v1855, %v1854
    %v1885 = vpack.c.b16 %v1857, %v1856
    %v1886 = vpack.c.b16 %v1859, %v1858
    %v1887 = vpack.c.b16 %v1861, %v1860
    %v1888 = vpack.c.b16 %v1863, %v1862
    %v1889 = vpack.c.b16 %v1865, %v1864
    %v1890 = vpack.c.b16 %v1867, %v1866
    %v1891 = vpack.c.b16 %v1869, %v1868
    %v1892 = vpack.c.b16 %v1871, %v1870
    %v1893 = vpack.c.b16 %v1873, %v1872
    %v1894 = vpack.c.b16 %v1875, %v1874
    %v1895 = vpack.c.b16 %v1877, %v1876
    %v1896 = vpack.c.b16 %v1879, %v1878
    %v1897 = vpack.c.b16 %v1881, %v1880
    %1914 = vmatprep.subr.bf16.mxu0 0
    %1915 = vmatpush1.bf16.msra.mxu0 %v1882
    %1916 = vmatprep.subr.bf16.mxu0 0
    %1917 = vmatpush1.bf16.msra.mxu0 %v1883
    %1918 = vmatprep.subr.bf16.mxu0 0
    %1919 = vmatpush1.bf16.msra.mxu0 %v1884
    %1920 = vmatprep.subr.bf16.mxu0 0
    %1921 = vmatpush1.bf16.msra.mxu0 %v1885
    %1922 = vmatprep.subr.bf16.mxu0 0
    %1923 = vmatpush1.bf16.msra.mxu0 %v1886
    %1924 = vmatprep.subr.bf16.mxu0 0
    %1925 = vmatpush1.bf16.msra.mxu0 %v1887
    %1926 = vmatprep.subr.bf16.mxu0 0
    %1927 = vmatpush1.bf16.msra.mxu0 %v1888
    %1928 = vmatprep.subr.bf16.mxu0 0
    %1929 = vmatpush1.bf16.msra.mxu0 %v1889
    %1930 = vmatprep.subr.bf16.mxu0 0
    %1931 = vmatpush1.bf16.msra.mxu0 %v1890
    %1932 = vmatprep.subr.bf16.mxu0 0
    %1933 = vmatpush1.bf16.msra.mxu0 %v1891
    %1934 = vmatprep.subr.bf16.mxu0 0
    %1935 = vmatpush1.bf16.msra.mxu0 %v1892
    %1936 = vmatprep.subr.bf16.mxu0 0
    %1937 = vmatpush1.bf16.msra.mxu0 %v1893
    %1938 = vmatprep.subr.bf16.mxu0 0
    %1939 = vmatpush1.bf16.msra.mxu0 %v1894
    %1940 = vmatprep.subr.bf16.mxu0 0
    %1941 = vmatpush1.bf16.msra.mxu0 %v1895
    %1942 = vmatprep.subr.bf16.mxu0 0
    %1943 = vmatpush1.bf16.msra.mxu0 %v1896
    %1944 = vmatprep.subr.bf16.mxu0 0
    %1945 = vmatpush1.bf16.msra.mxu0 %v1897
    %1946 = vmatprep.mubr.bf16.mxu0 %v1778
    %1947 = vmatmul.mubr.bf16.gmra.mrb[0].mxu0 %v1777
    %v1948 = vpop.f32.mrb[0].mxu0
    %v1949 = vadd.f32 %v1816, %v1948
    %v1950 = vpop.f32.mrb[0].mxu0
    %v1951 = vpop.f32.mrb[0].mxu0
    %v1952 = vpop.f32.mrb[0].mxu0
    %1953 = vdwg.mxu0
    %v1954 = vmax.f32 %v1949, 0.0
    %v1955 = vpack.c.bf16 %v1954, %v1954
    %v1956 = vld [vmem:[#allocation8] sm:$0xff]
    %v1957 = vld [vmem:[#allocation8 + $0x8] sm:$0xff]
    %v1958 = vld [vmem:[#allocation8 + $0x10] sm:$0xff]
    %v1959 = vld [vmem:[#allocation8 + $0x18] sm:$0xff]
    %v1960 = vld [vmem:[#allocation8 + $0x20] sm:$0xff]
    %v1961 = vld [vmem:[#allocation8 + $0x28] sm:$0xff]
    %v1962 = vld [vmem:[#allocation8 + $0x30] sm:$0xff]
    %v1963 = vld [vmem:[#allocation8 + $0x38] sm:$0xff]
    %v1964 = vld [vmem:[#allocation8 + $0x40] sm:$0xff]
    %v1965 = vld [vmem:[#allocation8 + $0x48] sm:$0xff]
    %v1966 = vld [vmem:[#allocation8 + $0x50] sm:$0xff]
    %v1967 = vld [vmem:[#allocation8 + $0x58] sm:$0xff]
    %v1968 = vld [vmem:[#allocation8 + $0x60] sm:$0xff]
    %v1969 = vld [vmem:[#allocation8 + $0x68] sm:$0xff]
    %v1970 = vld [vmem:[#allocation8 + $0x70] sm:$0xff]
    %v1971 = vld [vmem:[#allocation8 + $0x78] sm:$0xff]
    %v1972 = vld [vmem:[#allocation8 + $0x80] sm:$0xff]
    %v1973 = vld [vmem:[#allocation8 + $0x88] sm:$0xff]
    %v1974 = vld [vmem:[#allocation8 + $0x90] sm:$0xff]
    %v1975 = vld [vmem:[#allocation8 + $0x98] sm:$0xff]
    %v1976 = vld [vmem:[#allocation8 + $0xa0] sm:$0xff]
    %v1977 = vld [vmem:[#allocation8 + $0xa8] sm:$0xff]
    %v1978 = vld [vmem:[#allocation8 + $0xb0] sm:$0xff]
    %v1979 = vld [vmem:[#allocation8 + $0xb8] sm:$0xff]
    %v1980 = vld [vmem:[#allocation8 + $0xc0] sm:$0xff]
    %v1981 = vld [vmem:[#allocation8 + $0xc8] sm:$0xff]
    %v1982 = vld [vmem:[#allocation8 + $0xd0] sm:$0xff]
    %v1983 = vld [vmem:[#allocation8 + $0xd8] sm:$0xff]
    %v1984 = vld [vmem:[#allocation8 + $0xe0] sm:$0xff]
    %v1985 = vld [vmem:[#allocation8 + $0xe8] sm:$0xff]
    %v1986 = vld [vmem:[#allocation8 + $0xf0] sm:$0xff]
    %v1987 = vld [vmem:[#allocation8 + $0xf8] sm:$0xff]
    %v1988 = vld [vmem:[#allocation8 + $0x100] sm:$0xff]
    %v1989 = vld [vmem:[#allocation8 + $0x108] sm:$0xff]
    %v1990 = vld [vmem:[#allocation8 + $0x110] sm:$0xff]
    %v1991 = vld [vmem:[#allocation8 + $0x118] sm:$0xff]
    %v1992 = vld [vmem:[#allocation8 + $0x120] sm:$0xff]
    %v1993 = vld [vmem:[#allocation8 + $0x128] sm:$0xff]
    %v1994 = vld [vmem:[#allocation8 + $0x130] sm:$0xff]
    %v1995 = vld [vmem:[#allocation8 + $0x138] sm:$0xff]
    %v1996 = vld [vmem:[#allocation8 + $0x140] sm:$0xff]
    %v1997 = vld [vmem:[#allocation8 + $0x148] sm:$0xff]
    %v1998 = vld [vmem:[#allocation8 + $0x150] sm:$0xff]
    %v1999 = vld [vmem:[#allocation8 + $0x158] sm:$0xff]
    %v2000 = vld [vmem:[#allocation8 + $0x160] sm:$0xff]
    %v2001 = vld [vmem:[#allocation8 + $0x168] sm:$0xff]
    %v2002 = vld [vmem:[#allocation8 + $0x170] sm:$0xff]
    %v2003 = vld [vmem:[#allocation8 + $0x178] sm:$0xff]
    %v2004 = vld [vmem:[%s9] sm:$0x3f]
    %v2006 = vlaneseq
    %v2007 = vshrl.u32 %v2006, 7
    %v2008 = vsub.s32 0, %v2007
    %v2009 = vrot.slane %v2004, %v2008
    %v2010 = vlaneseq
    %v2011 = vshrl.u32 %v2010, 7
    %v2012 = vsub.s32 1, %v2011
    %v2013 = vrot.slane %v2004, %v2012
    %v2014 = vlaneseq
    %v2015 = vshrl.u32 %v2014, 7
    %v2016 = vsub.s32 2, %v2015
    %v2017 = vrot.slane %v2004, %v2016
    %v2018 = vlaneseq
    %v2019 = vshrl.u32 %v2018, 7
    %v2020 = vsub.s32 3, %v2019
    %v2021 = vrot.slane %v2004, %v2020
    %v2022 = vlaneseq
    %v2023 = vshrl.u32 %v2022, 7
    %v2024 = vsub.s32 4, %v2023
    %v2025 = vrot.slane %v2004, %v2024
    %v2026 = vlaneseq
    %v2027 = vshrl.u32 %v2026, 7
    %v2028 = vsub.s32 5, %v2027
    %v2029 = vrot.slane %v2004, %v2028
    %v2084 = vunpack.c.l.b16 %v1956
    %v2085 = vunpack.c.h.b16 %v1956
    %v2086 = vunpack.c.l.b16 %v1957
    %v2087 = vunpack.c.h.b16 %v1957
    %v2088 = vunpack.c.l.b16 %v1958
    %v2089 = vunpack.c.h.b16 %v1958
    %v2090 = vunpack.c.l.b16 %v1959
    %v2091 = vunpack.c.h.b16 %v1959
    %v2092 = vunpack.c.l.b16 %v1960
    %v2093 = vunpack.c.h.b16 %v1960
    %v2094 = vunpack.c.l.b16 %v1961
    %v2095 = vunpack.c.h.b16 %v1961
    %v2096 = vunpack.c.l.b16 %v1962
    %v2097 = vunpack.c.h.b16 %v1962
    %v2098 = vunpack.c.l.b16 %v1963
    %v2099 = vunpack.c.h.b16 %v1963
    %v2100 = vunpack.c.l.b16 %v1964
    %v2101 = vunpack.c.h.b16 %v1964
    %v2102 = vunpack.c.l.b16 %v1965
    %v2103 = vunpack.c.h.b16 %v1965
    %v2104 = vunpack.c.l.b16 %v1966
    %v2105 = vunpack.c.h.b16 %v1966
    %v2106 = vunpack.c.l.b16 %v1967
    %v2107 = vunpack.c.h.b16 %v1967
    %v2108 = vunpack.c.l.b16 %v1968
    %v2109 = vunpack.c.h.b16 %v1968
    %v2110 = vunpack.c.l.b16 %v1969
    %v2111 = vunpack.c.h.b16 %v1969
    %v2112 = vunpack.c.l.b16 %v1970
    %v2113 = vunpack.c.h.b16 %v1970
    %v2114 = vunpack.c.l.b16 %v1971
    %v2115 = vunpack.c.h.b16 %v1971
    %v2116 = vunpack.c.l.b16 %v1972
    %v2117 = vunpack.c.h.b16 %v1972
    %v2118 = vunpack.c.l.b16 %v1973
    %v2119 = vunpack.c.h.b16 %v1973
    %v2120 = vunpack.c.l.b16 %v1974
    %v2121 = vunpack.c.h.b16 %v1974
    %v2122 = vunpack.c.l.b16 %v1975
    %v2123 = vunpack.c.h.b16 %v1975
    %v2124 = vunpack.c.l.b16 %v1976
    %v2125 = vunpack.c.h.b16 %v1976
    %v2126 = vunpack.c.l.b16 %v1977
    %v2127 = vunpack.c.h.b16 %v1977
    %v2128 = vunpack.c.l.b16 %v1978
    %v2129 = vunpack.c.h.b16 %v1978
    %v2130 = vunpack.c.l.b16 %v1979
    %v2131 = vunpack.c.h.b16 %v1979
    %v2132 = vunpack.c.l.b16 %v1980
    %v2133 = vunpack.c.h.b16 %v1980
    %v2134 = vunpack.c.l.b16 %v1981
    %v2135 = vunpack.c.h.b16 %v1981
    %v2136 = vunpack.c.l.b16 %v1982
    %v2137 = vunpack.c.h.b16 %v1982
    %v2138 = vunpack.c.l.b16 %v1983
    %v2139 = vunpack.c.h.b16 %v1983
    %v2140 = vunpack.c.l.b16 %v1984
    %v2141 = vunpack.c.h.b16 %v1984
    %v2142 = vunpack.c.l.b16 %v1985
    %v2143 = vunpack.c.h.b16 %v1985
    %v2144 = vunpack.c.l.b16 %v1986
    %v2145 = vunpack.c.h.b16 %v1986
    %v2146 = vunpack.c.l.b16 %v1987
    %v2147 = vunpack.c.h.b16 %v1987
    %v2148 = vunpack.c.l.b16 %v1988
    %v2149 = vunpack.c.h.b16 %v1988
    %v2150 = vunpack.c.l.b16 %v1989
    %v2151 = vunpack.c.h.b16 %v1989
    %v2152 = vunpack.c.l.b16 %v1990
    %v2153 = vunpack.c.h.b16 %v1990
    %v2154 = vunpack.c.l.b16 %v1991
    %v2155 = vunpack.c.h.b16 %v1991
    %v2156 = vunpack.c.l.b16 %v1992
    %v2157 = vunpack.c.h.b16 %v1992
    %v2158 = vunpack.c.l.b16 %v1993
    %v2159 = vunpack.c.h.b16 %v1993
    %v2160 = vunpack.c.l.b16 %v1994
    %v2161 = vunpack.c.h.b16 %v1994
    %v2162 = vunpack.c.l.b16 %v1995
    %v2163 = vunpack.c.h.b16 %v1995
    %v2164 = vunpack.c.l.b16 %v1996
    %v2165 = vunpack.c.h.b16 %v1996
    %v2166 = vunpack.c.l.b16 %v1997
    %v2167 = vunpack.c.h.b16 %v1997
    %v2168 = vunpack.c.l.b16 %v1998
    %v2169 = vunpack.c.h.b16 %v1998
    %v2170 = vunpack.c.l.b16 %v1999
    %v2171 = vunpack.c.h.b16 %v1999
    %v2172 = vunpack.c.l.b16 %v2000
    %v2173 = vunpack.c.h.b16 %v2000
    %v2174 = vunpack.c.l.b16 %v2001
    %v2175 = vunpack.c.h.b16 %v2001
    %v2176 = vunpack.c.l.b16 %v2002
    %v2177 = vunpack.c.h.b16 %v2002
    %v2178 = vunpack.c.l.b16 %v2003
    %v2179 = vunpack.c.h.b16 %v2003
    %v2180 = vpack.c.b16 %v2090, %v2084
    %v2181 = vpack.c.b16 %v2091, %v2085
    %v2182 = vpack.c.b16 %v2092, %v2086
    %v2183 = vpack.c.b16 %v2093, %v2087
    %v2184 = vpack.c.b16 %v2094, %v2088
    %v2185 = vpack.c.b16 %v2095, %v2089
    %v2186 = vpack.c.b16 %v2102, %v2096
    %v2187 = vpack.c.b16 %v2103, %v2097
    %v2188 = vpack.c.b16 %v2104, %v2098
    %v2189 = vpack.c.b16 %v2105, %v2099
    %v2190 = vpack.c.b16 %v2106, %v2100
    %v2191 = vpack.c.b16 %v2107, %v2101
    %v2192 = vpack.c.b16 %v2114, %v2108
    %v2193 = vpack.c.b16 %v2115, %v2109
    %v2194 = vpack.c.b16 %v2116, %v2110
    %v2195 = vpack.c.b16 %v2117, %v2111
    %v2196 = vpack.c.b16 %v2118, %v2112
    %v2197 = vpack.c.b16 %v2119, %v2113
    %v2198 = vpack.c.b16 %v2126, %v2120
    %v2199 = vpack.c.b16 %v2127, %v2121
    %v2200 = vpack.c.b16 %v2128, %v2122
    %v2201 = vpack.c.b16 %v2129, %v2123
    %v2202 = vpack.c.b16 %v2130, %v2124
    %v2203 = vpack.c.b16 %v2131, %v2125
    %v2204 = vpack.c.b16 %v2138, %v2132
    %v2205 = vpack.c.b16 %v2139, %v2133
    %v2206 = vpack.c.b16 %v2140, %v2134
    %v2207 = vpack.c.b16 %v2141, %v2135
    %v2208 = vpack.c.b16 %v2142, %v2136
    %v2209 = vpack.c.b16 %v2143, %v2137
    %v2210 = vpack.c.b16 %v2150, %v2144
    %v2211 = vpack.c.b16 %v2151, %v2145
    %v2212 = vpack.c.b16 %v2152, %v2146
    %v2213 = vpack.c.b16 %v2153, %v2147
    %v2214 = vpack.c.b16 %v2154, %v2148
    %v2215 = vpack.c.b16 %v2155, %v2149
    %v2216 = vpack.c.b16 %v2162, %v2156
    %v2217 = vpack.c.b16 %v2163, %v2157
    %v2218 = vpack.c.b16 %v2164, %v2158
    %v2219 = vpack.c.b16 %v2165, %v2159
    %v2220 = vpack.c.b16 %v2166, %v2160
    %v2221 = vpack.c.b16 %v2167, %v2161
    %v2222 = vpack.c.b16 %v2174, %v2168
    %v2223 = vpack.c.b16 %v2175, %v2169
    %v2224 = vpack.c.b16 %v2176, %v2170
    %v2225 = vpack.c.b16 %v2177, %v2171
    %v2226 = vpack.c.b16 %v2178, %v2172
    %v2227 = vpack.c.b16 %v2179, %v2173
    %2276 = vmatprep.subr.bf16.mxu0 %v2181
    %2277 = vmatpush1.bf16.msra.mxu0 %v2180
    %2278 = vmatprep.subr.bf16.mxu0 %v2187
    %2279 = vmatpush1.bf16.msra.mxu0 %v2186
    %2280 = vmatprep.subr.bf16.mxu0 %v2193
    %2281 = vmatpush1.bf16.msra.mxu0 %v2192
    %2282 = vmatprep.subr.bf16.mxu0 %v2199
    %2283 = vmatpush1.bf16.msra.mxu0 %v2198
    %2284 = vmatprep.subr.bf16.mxu0 %v2205
    %2285 = vmatpush1.bf16.msra.mxu0 %v2204
    %2286 = vmatprep.subr.bf16.mxu0 %v2211
    %2287 = vmatpush1.bf16.msra.mxu0 %v2210
    %2288 = vmatprep.subr.bf16.mxu0 %v2217
    %2289 = vmatpush1.bf16.msra.mxu0 %v2216
    %2290 = vmatprep.subr.bf16.mxu0 %v2223
    %2291 = vmatpush1.bf16.msra.mxu0 %v2222
    %2292 = vmatprep.subr.bf16.mxu0 0
    %2293 = vmatpush1.bf16.msra.mxu0 0
    %2294 = vmatprep.subr.bf16.mxu0 0
    %2295 = vmatpush1.bf16.msra.mxu0 0
    %2296 = vmatprep.subr.bf16.mxu0 0
    %2297 = vmatpush1.bf16.msra.mxu0 0
    %2298 = vmatprep.subr.bf16.mxu0 0
    %2299 = vmatpush1.bf16.msra.mxu0 0
    %2300 = vmatprep.subr.bf16.mxu0 0
    %2301 = vmatpush1.bf16.msra.mxu0 0
    %2302 = vmatprep.subr.bf16.mxu0 0
    %2303 = vmatpush1.bf16.msra.mxu0 0
    %2304 = vmatprep.subr.bf16.mxu0 0
    %2305 = vmatpush1.bf16.msra.mxu0 0
    %2306 = vmatprep.subr.bf16.mxu0 0
    %2307 = vmatpush1.bf16.msra.mxu0 0
    %2308 = vmatprep.mubr.bf16.mxu0 0
    %2309 = vmatmul.mubr.bf16.gmra.mrb[0].mxu0 %v1955
    %v2310 = vpop.f32.mrb[0].mxu0
    %v2311 = vadd.f32 %v2009, %v2310
    %v2312 = vpop.f32.mrb[0].mxu0
    %v2313 = vadd.f32 %v2013, %v2312
    %v2314 = vpop.f32.mrb[0].mxu0
    %v2315 = vpop.f32.mrb[0].mxu0
    %2316 = vdwg.mxu0
    %2317 = vmatprep.subr.bf16.mxu0 %v2183
    %2318 = vmatpush1.bf16.msra.mxu0 %v2182
    %2319 = vmatprep.subr.bf16.mxu0 %v2189
    %2320 = vmatpush1.bf16.msra.mxu0 %v2188
    %2321 = vmatprep.subr.bf16.mxu0 %v2195
    %2322 = vmatpush1.bf16.msra.mxu0 %v2194
    %2323 = vmatprep.subr.bf16.mxu0 %v2201
    %2324 = vmatpush1.bf16.msra.mxu0 %v2200
    %2325 = vmatprep.subr.bf16.mxu0 %v2207
    %2326 = vmatpush1.bf16.msra.mxu0 %v2206
    %2327 = vmatprep.subr.bf16.mxu0 %v2213
    %2328 = vmatpush1.bf16.msra.mxu0 %v2212
    %2329 = vmatprep.subr.bf16.mxu0 %v2219
    %2330 = vmatpush1.bf16.msra.mxu0 %v2218
    %2331 = vmatprep.subr.bf16.mxu0 %v2225
    %2332 = vmatpush1.bf16.msra.mxu0 %v2224
    %2333 = vmatprep.subr.bf16.mxu0 0
    %2334 = vmatpush1.bf16.msra.mxu0 0
    %2335 = vmatprep.subr.bf16.mxu0 0
    %2336 = vmatpush1.bf16.msra.mxu0 0
    %2337 = vmatprep.subr.bf16.mxu0 0
    %2338 = vmatpush1.bf16.msra.mxu0 0
    %2339 = vmatprep.subr.bf16.mxu0 0
    %2340 = vmatpush1.bf16.msra.mxu0 0
    %2341 = vmatprep.subr.bf16.mxu0 0
    %2342 = vmatpush1.bf16.msra.mxu0 0
    %2343 = vmatprep.subr.bf16.mxu0 0
    %2344 = vmatpush1.bf16.msra.mxu0 0
    %2345 = vmatprep.subr.bf16.mxu0 0
    %2346 = vmatpush1.bf16.msra.mxu0 0
    %2347 = vmatprep.subr.bf16.mxu0 0
    %2348 = vmatpush1.bf16.msra.mxu0 0
    %2349 = vmatprep.mubr.bf16.mxu0 0
    %2350 = vmatmul.mubr.bf16.gmra.mrb[0].mxu0 %v1955
    %v2351 = vpop.f32.mrb[0].mxu0
    %v2352 = vadd.f32 %v2017, %v2351
    %v2353 = vpop.f32.mrb[0].mxu0
    %v2354 = vadd.f32 %v2021, %v2353
    %v2355 = vpop.f32.mrb[0].mxu0
    %v2356 = vpop.f32.mrb[0].mxu0
    %2357 = vdwg.mxu0
    %2358 = vmatprep.subr.bf16.mxu0 %v2185
    %2359 = vmatpush1.bf16.msra.mxu0 %v2184
    %2360 = vmatprep.subr.bf16.mxu0 %v2191
    %2361 = vmatpush1.bf16.msra.mxu0 %v2190
    %2362 = vmatprep.subr.bf16.mxu0 %v2197
    %2363 = vmatpush1.bf16.msra.mxu0 %v2196
    %2364 = vmatprep.subr.bf16.mxu0 %v2203
    %2365 = vmatpush1.bf16.msra.mxu0 %v2202
    %2366 = vmatprep.subr.bf16.mxu0 %v2209
    %2367 = vmatpush1.bf16.msra.mxu0 %v2208
    %2368 = vmatprep.subr.bf16.mxu0 %v2215
    %2369 = vmatpush1.bf16.msra.mxu0 %v2214
    %2370 = vmatprep.subr.bf16.mxu0 %v2221
    %2371 = vmatpush1.bf16.msra.mxu0 %v2220
    %2372 = vmatprep.subr.bf16.mxu0 %v2227
    %2373 = vmatpush1.bf16.msra.mxu0 %v2226
    %2374 = vmatprep.subr.bf16.mxu0 0
    %2375 = vmatpush1.bf16.msra.mxu0 0
    %2376 = vmatprep.subr.bf16.mxu0 0
    %2377 = vmatpush1.bf16.msra.mxu0 0
    %2378 = vmatprep.subr.bf16.mxu0 0
    %2379 = vmatpush1.bf16.msra.mxu0 0
    %2380 = vmatprep.subr.bf16.mxu0 0
    %2381 = vmatpush1.bf16.msra.mxu0 0
    %2382 = vmatprep.subr.bf16.mxu0 0
    %2383 = vmatpush1.bf16.msra.mxu0 0
    %2384 = vmatprep.subr.bf16.mxu0 0
    %2385 = vmatpush1.bf16.msra.mxu0 0
    %2386 = vmatprep.subr.bf16.mxu0 0
    %2387 = vmatpush1.bf16.msra.mxu0 0
    %2388 = vmatprep.subr.bf16.mxu0 0
    %2389 = vmatpush1.bf16.msra.mxu0 0
    %2390 = vmatprep.mubr.bf16.mxu0 0
    %2391 = vmatmul.mubr.bf16.gmra.mrb[0].mxu0 %v1955
    %v2392 = vpop.f32.mrb[0].mxu0
    %v2393 = vadd.f32 %v2025, %v2392
    %v2394 = vpop.f32.mrb[0].mxu0
    %v2395 = vadd.f32 %v2029, %v2394
    %v2396 = vpop.f32.mrb[0].mxu0
    %v2397 = vpop.f32.mrb[0].mxu0
    %2398 = vdwg.mxu0
    %2399 = vst [vmem:[%s10] sm:$0xff] %v2311
    %2400 = vst [vmem:[%s10 + $0x8] sm:$0xff] %v2313
    %2401 = vst [vmem:[%s10 + $0x10] sm:$0xff] %v2352
    %2402 = vst [vmem:[%s10 + $0x18] sm:$0xff] %v2354
    %2403 = vst [vmem:[%s10 + $0x20] sm:$0xff] %v2393
    %2404 = vst [vmem:[%s10 + $0x28] sm:$0xff] %v2395
    %v2405 = vmul.f32 %v94, %v2311
    %v2406 = vmul.f32 %v95, %v2313
    %v2407 = vmul.f32 %v96, %v2352
    %v2408 = vadd.f32 %v2405, %v2406
    %v2409 = vadd.f32 %v2408, %v2407
    %2410 = vadd.xlane.f32.xlu0 %v2409
    %v2411 = vpop.xlane.xlu0 %2410
    %v2412 = vrot.slane %v2411, 4
    %v2413 = vadd.f32 %v2411, %v2412
    %v2414 = vrot.slane %v2413, 2
    %v2415 = vadd.f32 %v2413, %v2414
    %v2416 = vrot.slane %v2415, 1
    %v2417 = vadd.f32 %v2415, %v2416
    %s2418 = vtos %v2417
    %v2419 = vld [vmem:[%s1] sm:$0xff]
    %v2420 = vld [vmem:[%s1 + $0x8] sm:$0xff]
    %v2421 = vld [vmem:[%s1 + $0x10] sm:$0xff]
    %v2422 = vmul.f32 %v2419, %v2354
    %v2423 = vmul.f32 %v2420, %v2393
    %v2424 = vmul.f32 %v2421, %v2395
    %v2425 = vadd.f32 %v2422, %v2423
    %v2426 = vadd.f32 %v2425, %v2424
    %2427 = vadd.xlane.f32.xlu0 %v2426
    %v2428 = vpop.xlane.xlu0 %2427
    %v2429 = vrot.slane %v2428, 4
    %v2430 = vadd.f32 %v2428, %v2429
    %v2431 = vrot.slane %v2430, 2
    %v2432 = vadd.f32 %v2430, %v2431
    %v2433 = vrot.slane %v2432, 1
    %v2434 = vadd.f32 %v2432, %v2433
    %s2435 = vtos %v2434
    %s2436 = ssub.f32 %s2418, %s2435
    %s2437 = scalar_lea.smem [#allocation10], 0
    %2438 = sst [smem:[%s2437]] %s2436
    // Predicated region
    $region58: #{neural_network_forward.1} parent=1 // pred_check
      _
    $region59: #{neural_network_forward.1} parent=1 // pred_check_branch
      %2440 = sbr.rel (0) target = $region61
    $region60: #{neural_network_forward.1} parent=1 // pred_region
      _
    $region61: #{neural_network_forward.1} parent=1 // pred_fallthru
      _
    // Predicated region
    $region62: #{neural_network_forward.1} parent=1 // pred_check
      _
    $region63: #{neural_network_forward.1} parent=1 // pred_check_branch
      %2442 = sbr.rel (0) target = $region65
    $region64: #{neural_network_forward.1} parent=1 // pred_region
      %s2444 = ssub.s32 16, 16
      %2445 = vsyncadd [#allocation4], %s2444
      %2448 = dma.smem_to_hbm [#allocation10], 16, %s11, [#allocation4]
    $region65: #{neural_network_forward.1} parent=1 // pred_fallthru
      _
    // Predicated region
    $region66: #{neural_network_forward.1} parent=1 // pred_check
      _
    $region67: #{neural_network_forward.1} parent=1 // pred_check_branch
      %2450 = sbr.rel (0) target = $region69
    $region68: #{neural_network_forward.1} parent=1 // pred_region
      _
    $region69: #{neural_network_forward.1} parent=1 // pred_fallthru
      _
    // Predicated region
    $region70: #{neural_network_forward.1} parent=1 // pred_check
      _
    $region71: #{neural_network_forward.1} parent=1 // pred_check_branch
      %2452 = sbr.rel (0) target = $region73
    $region72: #{neural_network_forward.1} parent=1 // pred_region
      %2453 = dma.done [#allocation4], 16
    $region73: #{neural_network_forward.1} parent=1 // pred_fallthru
      _
    %2454 = sfence
    %2455 = vsyncpa [#allocation3], 1
    %2456 = vsyncpa [#allocation6], 1
    %2457 = vsyncpa [#allocation9], 1
    %2458 = vsyncpa [#allocation4], 1

</llo_original>
